<compile_context>
chip_gen: v7x
topology: tpu7x:2x2x1
jax: 0.10.0
libtpu: 0.0.40
codegen_flags: <defaults>
</compile_context>

<pallas_src>
import math
import numpy as np
import jax
import jax.numpy as jnp
from jax.experimental import pallas as pl
from jax.experimental.pallas import tpu as pltpu

# ---- original model dims ----
INPUT_SHAPE = 100   # L so the encoder flattens to exactly 90 features
Z_SHAPE = 10
OUTPUT_SHAPE = 11
C = 9
D_FLAT = 90         # flattened encoder feature size (9 * 10)
LANE = 128

# ---- lane-padded dims (everything a 128-multiple, 256 where free) ----
D_IN_PAD = 1024     # 900  -> 1024  (flattened input)
H1_PAD = 256        # 180  -> 256   (conv1 output)
H2_PAD = 128        # 90   -> 128   (conv2 output)
Z_PAD = LANE        # 10   -> 128   (latent tile)
STATS_W = 2 * LANE  # fused [mu tile | logvar tile]
DC_W = 2 * LANE     # fused [d tile  | y tile]
D1_PAD = 256        # 180  -> 256   (deconv1 output)
OUT_PAD = 1024      # 900  -> 1024  (decoder output)
SMALL_W = 3 * LANE  # packed small output slab [mu | logvar | y]


# ----------------------------------------------------------------------------
# One-time glue: turn 1-D (transposed) convolutions into dense matmul operators
# acting on channel-major flattened activations (exactly what .view(B,-1) sees).
# ----------------------------------------------------------------------------
def conv1d_as_matmul(w, b, L_in, stride, padding):
    """Conv1d(w:(Co,Ci,K)) on flattened (Ci*L_in,) input -> (Co*L_out,)."""
    w = np.asarray(w, np.float32)
    b = np.asarray(b, np.float32)
    C_out, C_in, K = w.shape
    L_out = (L_in + 2 * padding - K) // stride + 1
    M = np.zeros((C_in * L_in, C_out * L_out), dtype=np.float32)
    for co in range(C_out):
        for ci in range(C_in):
            for t in range(L_out):
                for k in range(K):
                    s = t * stride + k - padding
                    if 0 <= s < L_in:
                        M[ci * L_in + s, co * L_out + t] += w[co, ci, k]
    b_full = np.repeat(b, L_out).astype(np.float32)
    return M, b_full, L_out


def convtranspose1d_as_matmul(w, b, L_in, stride, padding, output_padding):
    """ConvTranspose1d(w:(Ci,Co,K)) on flattened (Ci*L_in,) -> (Co*L_out,)."""
    w = np.asarray(w, np.float32)
    b = np.asarray(b, np.float32)
    C_in, C_out, K = w.shape
    L_out = (L_in - 1) * stride - 2 * padding + K + output_padding
    M = np.zeros((C_in * L_in, C_out * L_out), dtype=np.float32)
    for ci in range(C_in):
        for co in range(C_out):
            for j in range(L_in):
                for k in range(K):
                    t = j * stride - padding + k
                    if 0 <= t < L_out:
                        M[ci * L_in + j, co * L_out + t] += w[ci, co, k]
    b_full = np.repeat(b, L_out).astype(np.float32)
    return M, b_full, L_out


# ----------------------------------------------------------------------------
# Pallas kernel: full fused forward pass (single gridless call, all in VMEM).
# All widths are 128-lane multiples; weights bf16, accumulation + elementwise f32.
# ----------------------------------------------------------------------------
def imu_vae_kernel(x_ref, eps_ref,
                   m1_ref, b1_ref, m2_ref, b2_ref,
                   wmv_ref, bmv_ref, wdc_ref, bdc_ref,
                   md1_ref, bd1_ref, md2_ref, bd2_ref,
                   prex_ref, small_ref):
    f32 = jnp.float32
    bf16 = jnp.bfloat16
    x = x_ref[...]                                                  # (B, 1024)

    # encoder: conv1 + relu, conv2 + relu (bf16 MXU, f32 accumulation)
    h1 = jnp.maximum(
        jnp.dot(x.astype(bf16), m1_ref[...], preferred_element_type=f32)
        + b1_ref[...], 0.0)                                         # (B, 256)
    h2 = jnp.maximum(
        jnp.dot(h1.astype(bf16), m2_ref[...], preferred_element_type=f32)
        + b2_ref[...], 0.0)                                         # (B, 128)

    # fused encmean/encvar: (128, 256) matmul; mu in lane tile 0, logvar in tile 1.
    stats = (jnp.dot(h2.astype(bf16), wmv_ref[...], preferred_element_type=f32)
             + bmv_ref[...])                                        # (B, 256)
    mu_tile = stats[:, 0:LANE]
    lv_tile = stats[:, LANE:2 * LANE]

    # reparameterize on whole lane tiles: pad lanes stay 0 because
    # mu_pad = 0 and eps_pad = 0 (exp(0.5*0)=1 multiplied by 0).
    z_tile = mu_tile + eps_ref[...] * jnp.exp(0.5 * lv_tile)        # (B, 128)

    # fused dec_fc1/classifier: (128, 256) matmul (rows 10:128 are zero);
    # d in lane tile 0 (first 90 lanes), y in lane tile 1 (first 11 lanes).
    dz = (jnp.dot(z_tile.astype(bf16), wdc_ref[...], preferred_element_type=f32)
          + bdc_ref[...])                                           # (B, 256)
    d_tile = dz[:, 0:LANE]
    y_tile = dz[:, LANE:2 * LANE]

    # decoder: deconv1 + relu, deconv2 + sigmoid (bf16 MXU, f32 accumulation)
    d1 = jnp.maximum(
        jnp.dot(d_tile.astype(bf16), md1_ref[...], preferred_element_type=f32)
        + bd1_ref[...], 0.0)                                        # (B, 256)
    logits = (jnp.dot(d1.astype(bf16), md2_ref[...], preferred_element_type=f32)
              + bd2_ref[...])                                       # (B, 1024)
    # exact sigmoid: exp goes to the EUP, division guarantees output in [0, 1]
    prex_ref[...] = 1.0 / (1.0 + jnp.exp(-logits))

    # lane-dense packed small outputs (two 128-aligned stores):
    #   [0:128) mu (first 10 lanes) | [128:256) logvar | [256:384) y (first 11 lanes)
    small_ref[:, 0:2 * LANE] = stats
    small_ref[:, 2 * LANE:3 * LANE] = y_tile


# ----------------------------------------------------------------------------
# Parameter init (deterministic, PyTorch-style uniform bounds).
# ----------------------------------------------------------------------------
def init_params(key):
    ks = jax.random.split(key, 16)

    def u(k, shape, fan_in):
        bound = 1.0 / math.sqrt(fan_in)
        return np.asarray(jax.random.uniform(k, shape, jnp.float32, -bound, bound))

    p = {}
    p['enc_conv1_w'] = u(ks[0], (C, C, 10), C * 10)
    p['enc_conv1_b'] = u(ks[1], (C,), C * 10)
    p['enc_conv2_w'] = u(ks[2], (C, C, 4), C * 4)
    p['enc_conv2_b'] = u(ks[3], (C,), C * 4)
    p['encmean_w'] = u(ks[4], (Z_SHAPE, D_FLAT), D_FLAT)
    p['encmean_b'] = u(ks[5], (Z_SHAPE,), D_FLAT)
    p['encvar_w'] = u(ks[6], (Z_SHAPE, D_FLAT), D_FLAT)
    p['encvar_b'] = u(ks[7], (Z_SHAPE,), D_FLAT)
    p['dec_fc1_w'] = u(ks[8], (D_FLAT, Z_SHAPE), Z_SHAPE)
    p['dec_fc1_b'] = u(ks[9], (D_FLAT,), Z_SHAPE)
    p['dec_deconv1_w'] = u(ks[10], (C, C, 4), C * 4)    # (Cin, Cout, K)
    p['dec_deconv1_b'] = u(ks[11], (C,), C * 4)
    p['dec_deconv2_w'] = u(ks[12], (C, C, 10), C * 10)  # (Cin, Cout, K)
    p['dec_deconv2_b'] = u(ks[13], (C,), C * 10)
    p['cla_w'] = u(ks[14], (OUTPUT_SHAPE, Z_SHAPE), Z_SHAPE)
    p['cla_b'] = u(ks[15], (OUTPUT_SHAPE,), Z_SHAPE)
    return p


# ----------------------------------------------------------------------------
# One-time weight preparation: conv->matmul embeddings, lane-padding to
# 128/256 multiples, small-linear fusion, bf16 cast, device upload.
# ----------------------------------------------------------------------------
def _pad2(M, rows, cols):
    out = np.zeros((rows, cols), np.float32)
    out[:M.shape[0], :M.shape[1]] = M
    return out


def _padrow(b, cols):
    out = np.zeros((1, cols), np.float32)
    out[0, :b.shape[0]] = np.asarray(b, np.float32)
    return out


def prepare_weights(params):
    M1, b1f, L1 = conv1d_as_matmul(
        params['enc_conv1_w'], params['enc_conv1_b'], INPUT_SHAPE, stride=5, padding=3)
    M2, b2f, L2 = conv1d_as_matmul(
        params['enc_conv2_w'], params['enc_conv2_b'], L1, stride=2, padding=1)
    assert C * L2 == D_FLAT
    Md1, bd1f, Ld1 = convtranspose1d_as_matmul(
        params['dec_deconv1_w'], params['dec_deconv1_b'], L2,
        stride=2, padding=1, output_padding=0)
    Md2, bd2f, Ld2 = convtranspose1d_as_matmul(
        params['dec_deconv2_w'], params['dec_deconv2_b'], Ld1,
        stride=5, padding=3, output_padding=1)
    assert Ld2 == INPUT_SHAPE

    # Conv embeddings, zero-padded to lane-dense shapes (pad rows/cols are 0,
    # pad biases are 0, so ReLU keeps pad lanes at exactly 0).
    M1p = _pad2(M1, D_IN_PAD, H1_PAD)       # (1024, 256)
    M2p = _pad2(M2, H1_PAD, H2_PAD)         # (256, 128)
    Md1p = _pad2(Md1, LANE, D1_PAD)         # (128, 256)
    Md2p = _pad2(Md2, D1_PAD, OUT_PAD)      # (256, 1024)
    b1p = _padrow(b1f, H1_PAD)
    b2p = _padrow(b2f, H2_PAD)
    bd1p = _padrow(bd1f, D1_PAD)
    bd2p = _padrow(bd2f, OUT_PAD)

    # Fused encmean/encvar: (128, 256); mu at cols 0:10, logvar at cols 128:138.
    Wmv = np.zeros((H2_PAD, STATS_W), np.float32)
    Wmv[:D_FLAT, 0:Z_SHAPE] = np.asarray(params['encmean_w'], np.float32).T
    Wmv[:D_FLAT, LANE:LANE + Z_SHAPE] = np.asarray(params['encvar_w'], np.float32).T
    bmv = np.zeros((1, STATS_W), np.float32)
    bmv[0, 0:Z_SHAPE] = np.asarray(params['encmean_b'], np.float32)
    bmv[0, LANE:LANE + Z_SHAPE] = np.asarray(params['encvar_b'], np.float32)

    # Fused dec_fc1/classifier: (128, 256); d at cols 0:90, y at cols 128:139.
    # Rows 10:128 are zero so padded z lanes cannot leak into the result.
    Wdc = np.zeros((Z_PAD, DC_W), np.float32)
    Wdc[:Z_SHAPE, 0:D_FLAT] = np.asarray(params['dec_fc1_w'], np.float32).T
    Wdc[:Z_SHAPE, LANE:LANE + OUTPUT_SHAPE] = np.asarray(params['cla_w'], np.float32).T
    bdc = np.zeros((1, DC_W), np.float32)
    bdc[0, 0:D_FLAT] = np.asarray(params['dec_fc1_b'], np.float32)
    bdc[0, LANE:LANE + OUTPUT_SHAPE] = np.asarray(params['cla_b'], np.float32)

    # TODO(synk): the two big conv embeddings are ~90% sparse; an im2col-style
    # formulation (contraction dim Ci*K ~= 128) would shrink MXU weight
    # streaming ~10x — only worth it once the batched version is MXU-bound.
    W = {
        'M1': jnp.asarray(M1p, jnp.bfloat16), 'b1': jnp.asarray(b1p),
        'M2': jnp.asarray(M2p, jnp.bfloat16), 'b2': jnp.asarray(b2p),
        'Wmv': jnp.asarray(Wmv, jnp.bfloat16), 'bmv': jnp.asarray(bmv),
        'Wdc': jnp.asarray(Wdc, jnp.bfloat16), 'bdc': jnp.asarray(bdc),
        'Md1': jnp.asarray(Md1p, jnp.bfloat16), 'bd1': jnp.asarray(bd1p),
        'Md2': jnp.asarray(Md2p, jnp.bfloat16), 'bd2': jnp.asarray(bd2p),
    }
    return W


# ----------------------------------------------------------------------------
# Jitted forward wrapper (weights are device-resident, prepared once).
# ----------------------------------------------------------------------------
@jax.jit
def imu_vae_forward(x, eps, W):
    B = x.shape[0]
    x_flat = jnp.asarray(x, jnp.float32).reshape(B, C * INPUT_SHAPE)
    x_pad = jnp.pad(x_flat, ((0, 0), (0, D_IN_PAD - C * INPUT_SHAPE)))
    eps_pad = jnp.pad(jnp.asarray(eps, jnp.float32),
                      ((0, 0), (0, Z_PAD - Z_SHAPE)))

    operands = [
        x_pad, eps_pad,
        W['M1'], W['b1'], W['M2'], W['b2'],
        W['Wmv'], W['bmv'], W['Wdc'], W['bdc'],
        W['Md1'], W['bd1'], W['Md2'], W['bd2'],
    ]

    out_shapes = (
        jax.ShapeDtypeStruct((B, OUT_PAD), jnp.float32),    # padded pre_x flat
        jax.ShapeDtypeStruct((B, SMALL_W), jnp.float32),    # packed mu|logvar|y
    )

    flops = 2 * B * (D_IN_PAD * H1_PAD + H1_PAD * H2_PAD + H2_PAD * STATS_W
                     + Z_PAD * DC_W + LANE * D1_PAD + D1_PAD * OUT_PAD)
    bytes_in = sum(int(np.prod(o.shape)) * o.dtype.itemsize for o in operands)
    bytes_out = sum(int(np.prod(s.shape)) * s.dtype.itemsize for s in out_shapes)
    cost = pl.CostEstimate(flops=flops,
                           transcendentals=B * (LANE + OUT_PAD),
                           bytes_accessed=bytes_in + bytes_out)

    vmem = lambda: pl.BlockSpec(memory_space=pltpu.MemorySpace.VMEM)

    pre_x_pad, small = pl.pallas_call(
        imu_vae_kernel,
        out_shape=out_shapes,
        in_specs=[vmem() for _ in operands],
        out_specs=(vmem(), vmem()),
        cost_estimate=cost,
    )(*operands)

    pre_x = pre_x_pad[:, 0:C * INPUT_SHAPE].reshape(B, C, INPUT_SHAPE)
    mu = small[:, 0:Z_SHAPE]
    logvar = small[:, LANE:LANE + Z_SHAPE]
    y = small[:, 2 * LANE:2 * LANE + OUTPUT_SHAPE]
    return pre_x, y, mu, logvar


if __name__ == "__main__":
    key = jax.random.PRNGKey(0)
    k_x, k_eps, k_p = jax.random.split(key, 3)

    B = 2
    x = jax.random.uniform(k_x, (B, C, INPUT_SHAPE), dtype=jnp.float32)
    # Gaussian noise for the reparameterization trick (torch.randn_like eps)
    eps = jax.random.normal(k_eps, (B, Z_SHAPE), dtype=jnp.float32)
    params = init_params(k_p)
    W = prepare_weights(params)          # one-time host prep + device upload

    pre_x, y, mu, logvar = imu_vae_forward(x, eps, W)
    jax.block_until_ready((pre_x, y, mu, logvar))

    assert pre_x.shape == (B, C, INPUT_SHAPE)
    assert y.shape == (B, OUTPUT_SHAPE)
    assert mu.shape == (B, Z_SHAPE) and logvar.shape == (B, Z_SHAPE)
    assert bool(jnp.all(jnp.isfinite(pre_x))) and bool(jnp.all(jnp.isfinite(y)))
    assert bool(jnp.all(jnp.isfinite(mu))) and bool(jnp.all(jnp.isfinite(logvar)))
    assert bool(jnp.all(pre_x >= 0.0)) and bool(jnp.all(pre_x <= 1.0))  # sigmoid range

    print("KERNEL_OK")
</pallas_src>

<mosaic_0001>
module attributes {stable_mosaic.version = 11 : i64} {
  func.func @imu_vae_kernel(%arg0: memref<2x1024xf32, #tpu.memory_space<vmem>>, %arg1: memref<2x128xf32, #tpu.memory_space<vmem>>, %arg2: memref<1024x256xbf16, #tpu.memory_space<vmem>>, %arg3: memref<1x256xf32, #tpu.memory_space<vmem>>, %arg4: memref<256x128xbf16, #tpu.memory_space<vmem>>, %arg5: memref<1x128xf32, #tpu.memory_space<vmem>>, %arg6: memref<128x256xbf16, #tpu.memory_space<vmem>>, %arg7: memref<1x256xf32, #tpu.memory_space<vmem>>, %arg8: memref<128x256xbf16, #tpu.memory_space<vmem>>, %arg9: memref<1x256xf32, #tpu.memory_space<vmem>>, %arg10: memref<128x256xbf16, #tpu.memory_space<vmem>>, %arg11: memref<1x256xf32, #tpu.memory_space<vmem>>, %arg12: memref<256x1024xbf16, #tpu.memory_space<vmem>>, %arg13: memref<1x1024xf32, #tpu.memory_space<vmem>>, %arg14: memref<2x1024xf32, #tpu.memory_space<vmem>>, %arg15: memref<2x384xf32, #tpu.memory_space<vmem>>) attributes {dimension_semantics = [], scalar_prefetch = 0 : i64, scratch_operands = 0 : i64, tpu.core_type = #tpu.core_type<tc>} {
    %c0 = arith.constant 0 : index
    %c0_0 = arith.constant 0 : index
    %0 = vector.load %arg0[%c0, %c0_0] : memref<2x1024xf32, #tpu.memory_space<vmem>>, vector<2x1024xf32>
    %1 = arith.truncf %0 : vector<2x1024xf32> to vector<2x1024xbf16>
    %c0_1 = arith.constant 0 : index
    %c0_2 = arith.constant 0 : index
    %2 = vector.load %arg2[%c0_1, %c0_2] : memref<1024x256xbf16, #tpu.memory_space<vmem>>, vector<1024x256xbf16>
    %cst = arith.constant dense<0.000000e+00> : vector<2x256xf32>
    %3 = tpu.matmul %1, %2, %cst {dimension_numbers = #tpu.dot_dimension_numbers<[1], [0], [0], [1], [0, 0, 1, 1], [], []>} : vector<2x1024xbf16>, vector<1024x256xbf16>, vector<2x256xf32> -> vector<2x256xf32>
    %c0_3 = arith.constant 0 : index
    %c0_4 = arith.constant 0 : index
    %4 = vector.load %arg3[%c0_3, %c0_4] : memref<1x256xf32, #tpu.memory_space<vmem>>, vector<1x256xf32>
    %5 = vector.broadcast %4 : vector<1x256xf32> to vector<2x256xf32>
    %6 = arith.addf %3, %5 : vector<2x256xf32>
    %cst_5 = arith.constant 0.000000e+00 : f32
    %7 = vector.broadcast %cst_5 : f32 to vector<2x256xf32>
    %8 = arith.maximumf %6, %7 : vector<2x256xf32>
    %9 = arith.truncf %8 : vector<2x256xf32> to vector<2x256xbf16>
    %c0_6 = arith.constant 0 : index
    %c0_7 = arith.constant 0 : index
    %10 = vector.load %arg4[%c0_6, %c0_7] : memref<256x128xbf16, #tpu.memory_space<vmem>>, vector<256x128xbf16>
    %cst_8 = arith.constant dense<0.000000e+00> : vector<2x128xf32>
    %11 = tpu.matmul %9, %10, %cst_8 {dimension_numbers = #tpu.dot_dimension_numbers<[1], [0], [0], [1], [0, 0, 1, 1], [], []>} : vector<2x256xbf16>, vector<256x128xbf16>, vector<2x128xf32> -> vector<2x128xf32>
    %c0_9 = arith.constant 0 : index
    %c0_10 = arith.constant 0 : index
    %12 = vector.load %arg5[%c0_9, %c0_10] : memref<1x128xf32, #tpu.memory_space<vmem>>, vector<1x128xf32>
    %13 = vector.broadcast %12 : vector<1x128xf32> to vector<2x128xf32>
    %14 = arith.addf %11, %13 : vector<2x128xf32>
    %cst_11 = arith.constant 0.000000e+00 : f32
    %15 = vector.broadcast %cst_11 : f32 to vector<2x128xf32>
    %16 = arith.maximumf %14, %15 : vector<2x128xf32>
    %17 = arith.truncf %16 : vector<2x128xf32> to vector<2x128xbf16>
    %c0_12 = arith.constant 0 : index
    %c0_13 = arith.constant 0 : index
    %18 = vector.load %arg6[%c0_12, %c0_13] : memref<128x256xbf16, #tpu.memory_space<vmem>>, vector<128x256xbf16>
    %cst_14 = arith.constant dense<0.000000e+00> : vector<2x256xf32>
    %19 = tpu.matmul %17, %18, %cst_14 {dimension_numbers = #tpu.dot_dimension_numbers<[1], [0], [0], [1], [0, 0, 1, 1], [], []>} : vector<2x128xbf16>, vector<128x256xbf16>, vector<2x256xf32> -> vector<2x256xf32>
    %c0_15 = arith.constant 0 : index
    %c0_16 = arith.constant 0 : index
    %20 = vector.load %arg7[%c0_15, %c0_16] : memref<1x256xf32, #tpu.memory_space<vmem>>, vector<1x256xf32>
    %21 = vector.broadcast %20 : vector<1x256xf32> to vector<2x256xf32>
    %22 = arith.addf %19, %21 : vector<2x256xf32>
    %23 = vector.extract_strided_slice %22 {offsets = [0, 0], sizes = [2, 128], strides = [1, 1]} : vector<2x256xf32> to vector<2x128xf32>
    %24 = vector.extract_strided_slice %22 {offsets = [0, 128], sizes = [2, 128], strides = [1, 1]} : vector<2x256xf32> to vector<2x128xf32>
    %c0_17 = arith.constant 0 : index
    %c0_18 = arith.constant 0 : index
    %25 = vector.load %arg1[%c0_17, %c0_18] : memref<2x128xf32, #tpu.memory_space<vmem>>, vector<2x128xf32>
    %cst_19 = arith.constant 5.000000e-01 : f32
    %26 = vector.broadcast %cst_19 : f32 to vector<2x128xf32>
    %27 = arith.mulf %26, %24 : vector<2x128xf32>
    %28 = math.exp %27 : vector<2x128xf32>
    %29 = arith.mulf %25, %28 : vector<2x128xf32>
    %30 = arith.addf %23, %29 : vector<2x128xf32>
    %31 = arith.truncf %30 : vector<2x128xf32> to vector<2x128xbf16>
    %c0_20 = arith.constant 0 : index
    %c0_21 = arith.constant 0 : index
    %32 = vector.load %arg8[%c0_20, %c0_21] : memref<128x256xbf16, #tpu.memory_space<vmem>>, vector<128x256xbf16>
    %cst_22 = arith.constant dense<0.000000e+00> : vector<2x256xf32>
    %33 = tpu.matmul %31, %32, %cst_22 {dimension_numbers = #tpu.dot_dimension_numbers<[1], [0], [0], [1], [0, 0, 1, 1], [], []>} : vector<2x128xbf16>, vector<128x256xbf16>, vector<2x256xf32> -> vector<2x256xf32>
    %c0_23 = arith.constant 0 : index
    %c0_24 = arith.constant 0 : index
    %34 = vector.load %arg9[%c0_23, %c0_24] : memref<1x256xf32, #tpu.memory_space<vmem>>, vector<1x256xf32>
    %35 = vector.broadcast %34 : vector<1x256xf32> to vector<2x256xf32>
    %36 = arith.addf %33, %35 : vector<2x256xf32>
    %37 = vector.extract_strided_slice %36 {offsets = [0, 0], sizes = [2, 128], strides = [1, 1]} : vector<2x256xf32> to vector<2x128xf32>
    %38 = vector.extract_strided_slice %36 {offsets = [0, 128], sizes = [2, 128], strides = [1, 1]} : vector<2x256xf32> to vector<2x128xf32>
    %39 = arith.truncf %37 : vector<2x128xf32> to vector<2x128xbf16>
    %c0_25 = arith.constant 0 : index
    %c0_26 = arith.constant 0 : index
    %40 = vector.load %arg10[%c0_25, %c0_26] : memref<128x256xbf16, #tpu.memory_space<vmem>>, vector<128x256xbf16>
    %cst_27 = arith.constant dense<0.000000e+00> : vector<2x256xf32>
    %41 = tpu.matmul %39, %40, %cst_27 {dimension_numbers = #tpu.dot_dimension_numbers<[1], [0], [0], [1], [0, 0, 1, 1], [], []>} : vector<2x128xbf16>, vector<128x256xbf16>, vector<2x256xf32> -> vector<2x256xf32>
    %c0_28 = arith.constant 0 : index
    %c0_29 = arith.constant 0 : index
    %42 = vector.load %arg11[%c0_28, %c0_29] : memref<1x256xf32, #tpu.memory_space<vmem>>, vector<1x256xf32>
    %43 = vector.broadcast %42 : vector<1x256xf32> to vector<2x256xf32>
    %44 = arith.addf %41, %43 : vector<2x256xf32>
    %cst_30 = arith.constant 0.000000e+00 : f32
    %45 = vector.broadcast %cst_30 : f32 to vector<2x256xf32>
    %46 = arith.maximumf %44, %45 : vector<2x256xf32>
    %47 = arith.truncf %46 : vector<2x256xf32> to vector<2x256xbf16>
    %c0_31 = arith.constant 0 : index
    %c0_32 = arith.constant 0 : index
    %48 = vector.load %arg12[%c0_31, %c0_32] : memref<256x1024xbf16, #tpu.memory_space<vmem>>, vector<256x1024xbf16>
    %cst_33 = arith.constant dense<0.000000e+00> : vector<2x1024xf32>
    %49 = tpu.matmul %47, %48, %cst_33 {dimension_numbers = #tpu.dot_dimension_numbers<[1], [0], [0], [1], [0, 0, 1, 1], [], []>} : vector<2x256xbf16>, vector<256x1024xbf16>, vector<2x1024xf32> -> vector<2x1024xf32>
    %c0_34 = arith.constant 0 : index
    %c0_35 = arith.constant 0 : index
    %50 = vector.load %arg13[%c0_34, %c0_35] : memref<1x1024xf32, #tpu.memory_space<vmem>>, vector<1x1024xf32>
    %51 = vector.broadcast %50 : vector<1x1024xf32> to vector<2x1024xf32>
    %52 = arith.addf %49, %51 : vector<2x1024xf32>
    %cst_36 = arith.constant 0.000000e+00 : f32
    %53 = vector.broadcast %cst_36 : f32 to vector<2x1024xf32>
    %54 = arith.subf %53, %52 : vector<2x1024xf32>
    %55 = math.exp %54 : vector<2x1024xf32>
    %cst_37 = arith.constant 1.000000e+00 : f32
    %56 = vector.broadcast %cst_37 : f32 to vector<2x1024xf32>
    %57 = arith.addf %56, %55 : vector<2x1024xf32>
    %cst_38 = arith.constant 1.000000e+00 : f32
    %58 = vector.broadcast %cst_38 : f32 to vector<2x1024xf32>
    %59 = arith.divf %58, %57 : vector<2x1024xf32>
    %c0_39 = arith.constant 0 : index
    %c0_40 = arith.constant 0 : index
    %60 = vector.load %arg14[%c0_39, %c0_40] : memref<2x1024xf32, #tpu.memory_space<vmem>>, vector<2x1024xf32>
    tpu.vector_store %arg14[%c0_39, %c0_40], %59 {strides = array<i32>} : memref<2x1024xf32, #tpu.memory_space<vmem>>, vector<2x1024xf32>,
    %c0_41 = arith.constant 0 : index
    %c0_42 = arith.constant 0 : index
    %61 = vector.load %arg15[%c0_41, %c0_42] : memref<2x384xf32, #tpu.memory_space<vmem>>, vector<2x256xf32>
    tpu.vector_store %arg15[%c0_41, %c0_42], %22 {strides = array<i32>} : memref<2x384xf32, #tpu.memory_space<vmem>>, vector<2x256xf32>,
    %c0_43 = arith.constant 0 : index
    %c256 = arith.constant 256 : index
    %62 = vector.load %arg15[%c0_43, %c256] : memref<2x384xf32, #tpu.memory_space<vmem>>, vector<2x128xf32>
    tpu.vector_store %arg15[%c0_43, %c256], %38 {strides = array<i32>} : memref<2x384xf32, #tpu.memory_space<vmem>>, vector<2x128xf32>,
    return
  }
}

</mosaic_0001>

<llo_original>
// kernel: imu_vae_forward.1
$region0: #{imu_vae_forward.1}
  #allocation0 [shape = 'u32[]', space=smem, size = 0x4, offset = 0x4, fixed_abs, tag = 'smem constant byte address 0x4 - core index']
  #allocation1 [shape = 'u32[144,128]{1,0:T(1,128)}', space=vmem, size = 0x12000, scoped, tag = 'internal scratch']
  %s0 = inlined_call_operand.vmem [shape: f32[2,1024], index: 0, kind: input, shape index: {}]
  %s1 = inlined_call_operand.vmem [shape: f32[2,128], index: 1, kind: input, shape index: {}]
  %s2 = inlined_call_operand.hbm [shape: bf16[1024,256], index: 2, kind: input, shape index: {}]
  %s3 = inlined_call_operand.vmem [shape: f32[1,256], index: 3, kind: input, shape index: {}]
  %s4 = inlined_call_operand.vmem [shape: bf16[256,128], index: 4, kind: input, shape index: {}]
  %s5 = inlined_call_operand.vmem [shape: f32[1,128], index: 5, kind: input, shape index: {}]
  %s6 = inlined_call_operand.hbm [shape: bf16[128,256], index: 6, kind: input, shape index: {}]
  %s7 = inlined_call_operand.vmem [shape: f32[1,256], index: 7, kind: input, shape index: {}]
  %s8 = inlined_call_operand.hbm [shape: bf16[128,256], index: 8, kind: input, shape index: {}]
  %s9 = inlined_call_operand.vmem [shape: f32[1,256], index: 9, kind: input, shape index: {}]
  %s10 = inlined_call_operand.hbm [shape: bf16[128,256], index: 10, kind: input, shape index: {}]
  %s11 = inlined_call_operand.vmem [shape: f32[1,256], index: 11, kind: input, shape index: {}]
  %s12 = inlined_call_operand.hbm [shape: bf16[256,1024], index: 12, kind: input, shape index: {}]
  %s13 = inlined_call_operand.vmem [shape: f32[1,1024], index: 13, kind: input, shape index: {}]
  %s14 = inlined_call_operand.vmem [shape: f32[2,1024], index: 14, kind: output, shape index: {0}]
  %s15 = inlined_call_operand.vmem [shape: f32[2,384], index: 15, kind: output, shape index: {1}]
  %16 = xla_tuple %s14, %s15
  %s17 = sld [smem:[#allocation0]]
  $region94: #{imu_vae_forward.1} parent=0
    _
  %s19 = ssub.s32 1, %s17
  %s20 = scalar_select 0, %s19, %s17
  $region1: #{imu_vae_forward.1} parent=0
    #allocation2 [shape = 'u8[524288]{0}', space=vmem, size = 0x80000, scoped, tag = 'input window, operand 2, single buffered']
    #allocation3 [shape = 's32[1]{0}', space=sflag, size = 0x4, scoped, tag = 'scoped memory for imu_vae_forward.1']
    #allocation4 [shape = 'u8[65536]{0}', space=vmem, size = 0x10000, scoped, tag = 'input window, operand 6, single buffered']
    #allocation5 [shape = 's32[1]{0}', space=sflag, size = 0x4, scoped, tag = 'scoped memory for imu_vae_forward.1']
    #allocation6 [shape = 'u8[65536]{0}', space=vmem, size = 0x10000, scoped, tag = 'input window, operand 8, single buffered']
    #allocation7 [shape = 'u8[65536]{0}', space=vmem, size = 0x10000, scoped, tag = 'input window, operand 10, single buffered']
    #allocation8 [shape = 's32[1]{0}', space=sflag, size = 0x4, scoped, tag = 'scoped memory for imu_vae_forward.1']
    #allocation9 [shape = 'u8[524288]{0}', space=vmem, size = 0x80000, scoped, tag = 'input window, operand 12, single buffered']
    %21 = vsyncpa [#allocation3], 0
    %22 = vsyncpa [#allocation5], 0
    %23 = vsyncpa [#allocation8], 0
    // Predicated region
    $region2: #{imu_vae_forward.1} parent=1 // pred_check
      _
    $region3: #{imu_vae_forward.1} parent=1 // pred_check_branch
      %25 = sbr.rel (0) target = $region5
    $region4: #{imu_vae_forward.1} parent=1 // pred_region
      _
    $region5: #{imu_vae_forward.1} parent=1 // pred_fallthru
      _
    // Predicated region
    $region6: #{imu_vae_forward.1} parent=1 // pred_check
      _
    $region7: #{imu_vae_forward.1} parent=1 // pred_check_branch
      %27 = sbr.rel (0) target = $region9
    $region8: #{imu_vae_forward.1} parent=1 // pred_region
      _
    $region9: #{imu_vae_forward.1} parent=1 // pred_fallthru
      _
    // Predicated region
    $region10: #{imu_vae_forward.1} parent=1 // pred_check
      _
    $region11: #{imu_vae_forward.1} parent=1 // pred_check_branch
      %29 = sbr.rel (0) target = $region13
    $region12: #{imu_vae_forward.1} parent=1 // pred_region
      %s31 = ssub.s32 16384, 16384
      %32 = vsyncadd [#allocation3], %s31
      %s33 = sshll.u32 [#allocation2], 4
      %s34 = int_to_ptr.vmem [resolvable:$true] %s33
      %39 = dma.hbm_to_vmem [thread:$0]  %s2, 16384, %s34, [#allocation3], 128, 128, 8
    $region13: #{imu_vae_forward.1} parent=1 // pred_fallthru
      _
    // Predicated region
    $region14: #{imu_vae_forward.1} parent=1 // pred_check
      _
    $region15: #{imu_vae_forward.1} parent=1 // pred_check_branch
      %41 = sbr.rel (0) target = $region17
    $region16: #{imu_vae_forward.1} parent=1 // pred_region
      _
    $region17: #{imu_vae_forward.1} parent=1 // pred_fallthru
      _
    // Predicated region
    $region18: #{imu_vae_forward.1} parent=1 // pred_check
      _
    $region19: #{imu_vae_forward.1} parent=1 // pred_check_branch
      %43 = sbr.rel (0) target = $region21
    $region20: #{imu_vae_forward.1} parent=1 // pred_region
      _
    $region21: #{imu_vae_forward.1} parent=1 // pred_fallthru
      _
    // Predicated region
    $region22: #{imu_vae_forward.1} parent=1 // pred_check
      _
    $region23: #{imu_vae_forward.1} parent=1 // pred_check_branch
      %45 = sbr.rel (0) target = $region25
    $region24: #{imu_vae_forward.1} parent=1 // pred_region
      _
    $region25: #{imu_vae_forward.1} parent=1 // pred_fallthru
      _
    // Predicated region
    $region26: #{imu_vae_forward.1} parent=1 // pred_check
      _
    $region27: #{imu_vae_forward.1} parent=1 // pred_check_branch
      %47 = sbr.rel (0) target = $region29
    $region28: #{imu_vae_forward.1} parent=1 // pred_region
      %s49 = ssub.s32 2048, 2048
      %50 = vsyncadd [#allocation5], %s49
      %s51 = sshll.u32 [#allocation4], 4
      %s52 = int_to_ptr.vmem [resolvable:$true] %s51
      %57 = dma.hbm_to_vmem [thread:$0]  %s6, 2048, %s52, [#allocation5], 128, 128, 8
    $region29: #{imu_vae_forward.1} parent=1 // pred_fallthru
      _
    // Predicated region
    $region30: #{imu_vae_forward.1} parent=1 // pred_check
      _
    $region31: #{imu_vae_forward.1} parent=1 // pred_check_branch
      %59 = sbr.rel (0) target = $region33
    $region32: #{imu_vae_forward.1} parent=1 // pred_region
      _
    $region33: #{imu_vae_forward.1} parent=1 // pred_fallthru
      _
    // Predicated region
    $region34: #{imu_vae_forward.1} parent=1 // pred_check
      _
    $region35: #{imu_vae_forward.1} parent=1 // pred_check_branch
      %61 = sbr.rel (0) target = $region37
    $region36: #{imu_vae_forward.1} parent=1 // pred_region
      %s63 = ssub.s32 2048, 2048
      %64 = vsyncadd [#allocation5], %s63
      %s65 = sshll.u32 [#allocation6], 4
      %s66 = int_to_ptr.vmem [resolvable:$true] %s65
      %71 = dma.hbm_to_vmem [thread:$0]  %s8, 2048, %s66, [#allocation5], 128, 128, 8
    $region37: #{imu_vae_forward.1} parent=1 // pred_fallthru
      _
    // Predicated region
    $region38: #{imu_vae_forward.1} parent=1 // pred_check
      _
    $region39: #{imu_vae_forward.1} parent=1 // pred_check_branch
      %73 = sbr.rel (0) target = $region41
    $region40: #{imu_vae_forward.1} parent=1 // pred_region
      _
    $region41: #{imu_vae_forward.1} parent=1 // pred_fallthru
      _
    // Predicated region
    $region42: #{imu_vae_forward.1} parent=1 // pred_check
      _
    $region43: #{imu_vae_forward.1} parent=1 // pred_check_branch
      %75 = sbr.rel (0) target = $region45
    $region44: #{imu_vae_forward.1} parent=1 // pred_region
      %s77 = ssub.s32 2048, 2048
      %78 = vsyncadd [#allocation8], %s77
      %s79 = sshll.u32 [#allocation7], 4
      %s80 = int_to_ptr.vmem [resolvable:$true] %s79
      %85 = dma.hbm_to_vmem [thread:$0]  %s10, 2048, %s80, [#allocation8], 128, 128, 8
    $region45: #{imu_vae_forward.1} parent=1 // pred_fallthru
      _
    // Predicated region
    $region46: #{imu_vae_forward.1} parent=1 // pred_check
      _
    $region47: #{imu_vae_forward.1} parent=1 // pred_check_branch
      %87 = sbr.rel (0) target = $region49
    $region48: #{imu_vae_forward.1} parent=1 // pred_region
      _
    $region49: #{imu_vae_forward.1} parent=1 // pred_fallthru
      _
    // Predicated region
    $region50: #{imu_vae_forward.1} parent=1 // pred_check
      _
    $region51: #{imu_vae_forward.1} parent=1 // pred_check_branch
      %89 = sbr.rel (0) target = $region53
    $region52: #{imu_vae_forward.1} parent=1 // pred_region
      %s91 = ssub.s32 16384, 16384
      %92 = vsyncadd [#allocation8], %s91
      %s93 = sshll.u32 [#allocation9], 4
      %s94 = int_to_ptr.vmem [resolvable:$true] %s93
      %99 = dma.hbm_to_vmem [thread:$0]  %s12, 16384, %s94, [#allocation8], 512, 512, 32
    $region53: #{imu_vae_forward.1} parent=1 // pred_fallthru
      _
    // Predicated region
    $region54: #{imu_vae_forward.1} parent=1 // pred_check
      _
    $region55: #{imu_vae_forward.1} parent=1 // pred_check_branch
      %101 = sbr.rel (0) target = $region57
    $region56: #{imu_vae_forward.1} parent=1 // pred_region
      _
    $region57: #{imu_vae_forward.1} parent=1 // pred_fallthru
      _
    // Predicated region
    $region58: #{imu_vae_forward.1} parent=1 // pred_check
      _
    $region59: #{imu_vae_forward.1} parent=1 // pred_check_branch
      %103 = sbr.rel (0) target = $region61
    $region60: #{imu_vae_forward.1} parent=1 // pred_region
      %104 = dma.done [#allocation3], 16384
    $region61: #{imu_vae_forward.1} parent=1 // pred_fallthru
      _
    // Predicated region
    $region62: #{imu_vae_forward.1} parent=1 // pred_check
      _
    $region63: #{imu_vae_forward.1} parent=1 // pred_check_branch
      %106 = sbr.rel (0) target = $region65
    $region64: #{imu_vae_forward.1} parent=1 // pred_region
      %107 = dma.done [#allocation5], 2048
    $region65: #{imu_vae_forward.1} parent=1 // pred_fallthru
      _
    // Predicated region
    $region66: #{imu_vae_forward.1} parent=1 // pred_check
      _
    $region67: #{imu_vae_forward.1} parent=1 // pred_check_branch
      %109 = sbr.rel (0) target = $region69
    $region68: #{imu_vae_forward.1} parent=1 // pred_region
      %110 = dma.done [#allocation5], 2048
    $region69: #{imu_vae_forward.1} parent=1 // pred_fallthru
      _
    // Predicated region
    $region70: #{imu_vae_forward.1} parent=1 // pred_check
      _
    $region71: #{imu_vae_forward.1} parent=1 // pred_check_branch
      %112 = sbr.rel (0) target = $region73
    $region72: #{imu_vae_forward.1} parent=1 // pred_region
      %113 = dma.done [#allocation8], 2048
    $region73: #{imu_vae_forward.1} parent=1 // pred_fallthru
      _
    // Predicated region
    $region74: #{imu_vae_forward.1} parent=1 // pred_check
      _
    $region75: #{imu_vae_forward.1} parent=1 // pred_check_branch
      %115 = sbr.rel (0) target = $region77
    $region76: #{imu_vae_forward.1} parent=1 // pred_region
      %116 = dma.done [#allocation8], 16384
    $region77: #{imu_vae_forward.1} parent=1 // pred_fallthru
      _
    %v118 = vld [vmem:[%s0] sm:$0xff]
    %v119 = vld [vmem:[%s0 + $0x8] sm:$0xff]
    %v122 = vcombine.high %v118, %v118
    %v124 = vunpack.c.l.s4 1983009808
    %v125 = vunpack.c.0.s8 %v124
    %v126 = vlaneseq
    %v127 = vshrl.u32 %v126, 7
    %v128 = vsub.s32 %v125, %v127
    %v129 = vrot.slane %v118, %v128
    %v131 = vunpack.c.l.s4 1983009808
    %v132 = vunpack.c.0.s8 %v131
    %v133 = vlaneseq
    %v134 = vshrl.u32 %v133, 7
    %v135 = vsub.s32 %v132, %v134
    %v136 = vrot.slane %v122, %v135
    %v137 = vcombine.high %v129, %v129
    %v138 = vcombine.high %v136, %v136
    %v139 = vcombine.high %v119, %v119
    %v141 = vunpack.c.l.s4 1983009808
    %v142 = vunpack.c.0.s8 %v141
    %v143 = vlaneseq
    %v144 = vshrl.u32 %v143, 7
    %v145 = vsub.s32 %v142, %v144
    %v146 = vrot.slane %v119, %v145
    %v148 = vunpack.c.l.s4 1983009808
    %v149 = vunpack.c.0.s8 %v148
    %v150 = vlaneseq
    %v151 = vshrl.u32 %v150, 7
    %v152 = vsub.s32 %v149, %v151
    %v153 = vrot.slane %v139, %v152
    %v154 = vcombine.high %v146, %v146
    %v155 = vcombine.high %v153, %v153
    %v164 = vpack.c.bf16 %v129, %v129
    %v165 = vpack.c.bf16 %v137, %v137
    %v166 = vpack.c.bf16 %v136, %v136
    %v167 = vpack.c.bf16 %v138, %v138
    %v168 = vpack.c.bf16 %v146, %v146
    %v169 = vpack.c.bf16 %v154, %v154
    %v170 = vpack.c.bf16 %v153, %v153
    %v171 = vpack.c.bf16 %v155, %v155
    %v172 = vld [vmem:[#allocation2] sm:$0xff]
    %v173 = vld [vmem:[#allocation2 + $0x8] sm:$0xff]
    %v174 = vld [vmem:[#allocation2 + $0x10] sm:$0xff]
    %v175 = vld [vmem:[#allocation2 + $0x18] sm:$0xff]
    %v176 = vld [vmem:[#allocation2 + $0x20] sm:$0xff]
    %v177 = vld [vmem:[#allocation2 + $0x28] sm:$0xff]
    %v178 = vld [vmem:[#allocation2 + $0x30] sm:$0xff]
    %v179 = vld [vmem:[#allocation2 + $0x38] sm:$0xff]
    %v180 = vld [vmem:[#allocation2 + $0x40] sm:$0xff]
    %v181 = vld [vmem:[#allocation2 + $0x48] sm:$0xff]
    %v182 = vld [vmem:[#allocation2 + $0x50] sm:$0xff]
    %v183 = vld [vmem:[#allocation2 + $0x58] sm:$0xff]
    %v184 = vld [vmem:[#allocation2 + $0x60] sm:$0xff]
    %v185 = vld [vmem:[#allocation2 + $0x68] sm:$0xff]
    %v186 = vld [vmem:[#allocation2 + $0x70] sm:$0xff]
    %v187 = vld [vmem:[#allocation2 + $0x78] sm:$0xff]
    %v188 = vld [vmem:[#allocation2 + $0x80] sm:$0xff]
    %v189 = vld [vmem:[#allocation2 + $0x88] sm:$0xff]
    %v190 = vld [vmem:[#allocation2 + $0x90] sm:$0xff]
    %v191 = vld [vmem:[#allocation2 + $0x98] sm:$0xff]
    %v192 = vld [vmem:[#allocation2 + $0xa0] sm:$0xff]
    %v193 = vld [vmem:[#allocation2 + $0xa8] sm:$0xff]
    %v194 = vld [vmem:[#allocation2 + $0xb0] sm:$0xff]
    %v195 = vld [vmem:[#allocation2 + $0xb8] sm:$0xff]
    %v196 = vld [vmem:[#allocation2 + $0xc0] sm:$0xff]
    %v197 = vld [vmem:[#allocation2 + $0xc8] sm:$0xff]
    %v198 = vld [vmem:[#allocation2 + $0xd0] sm:$0xff]
    %v199 = vld [vmem:[#allocation2 + $0xd8] sm:$0xff]
    %v200 = vld [vmem:[#allocation2 + $0xe0] sm:$0xff]
    %v201 = vld [vmem:[#allocation2 + $0xe8] sm:$0xff]
    %v202 = vld [vmem:[#allocation2 + $0xf0] sm:$0xff]
    %v203 = vld [vmem:[#allocation2 + $0xf8] sm:$0xff]
    %v204 = vld [vmem:[#allocation2 + $0x100] sm:$0xff]
    %v205 = vld [vmem:[#allocation2 + $0x108] sm:$0xff]
    %v206 = vld [vmem:[#allocation2 + $0x110] sm:$0xff]
    %v207 = vld [vmem:[#allocation2 + $0x118] sm:$0xff]
    %v208 = vld [vmem:[#allocation2 + $0x120] sm:$0xff]
    %v209 = vld [vmem:[#allocation2 + $0x128] sm:$0xff]
    %v210 = vld [vmem:[#allocation2 + $0x130] sm:$0xff]
    %v211 = vld [vmem:[#allocation2 + $0x138] sm:$0xff]
    %v212 = vld [vmem:[#allocation2 + $0x140] sm:$0xff]
    %v213 = vld [vmem:[#allocation2 + $0x148] sm:$0xff]
    %v214 = vld [vmem:[#allocation2 + $0x150] sm:$0xff]
    %v215 = vld [vmem:[#allocation2 + $0x158] sm:$0xff]
    %v216 = vld [vmem:[#allocation2 + $0x160] sm:$0xff]
    %v217 = vld [vmem:[#allocation2 + $0x168] sm:$0xff]
    %v218 = vld [vmem:[#allocation2 + $0x170] sm:$0xff]
    %v219 = vld [vmem:[#allocation2 + $0x178] sm:$0xff]
    %v220 = vld [vmem:[#allocation2 + $0x180] sm:$0xff]
    %v221 = vld [vmem:[#allocation2 + $0x188] sm:$0xff]
    %v222 = vld [vmem:[#allocation2 + $0x190] sm:$0xff]
    %v223 = vld [vmem:[#allocation2 + $0x198] sm:$0xff]
    %v224 = vld [vmem:[#allocation2 + $0x1a0] sm:$0xff]
    %v225 = vld [vmem:[#allocation2 + $0x1a8] sm:$0xff]
    %v226 = vld [vmem:[#allocation2 + $0x1b0] sm:$0xff]
    %v227 = vld [vmem:[#allocation2 + $0x1b8] sm:$0xff]
    %v228 = vld [vmem:[#allocation2 + $0x1c0] sm:$0xff]
    %v229 = vld [vmem:[#allocation2 + $0x1c8] sm:$0xff]
    %v230 = vld [vmem:[#allocation2 + $0x1d0] sm:$0xff]
    %v231 = vld [vmem:[#allocation2 + $0x1d8] sm:$0xff]
    %v232 = vld [vmem:[#allocation2 + $0x1e0] sm:$0xff]
    %v233 = vld [vmem:[#allocation2 + $0x1e8] sm:$0xff]
    %v234 = vld [vmem:[#allocation2 + $0x1f0] sm:$0xff]
    %v235 = vld [vmem:[#allocation2 + $0x1f8] sm:$0xff]
    %v236 = vld [vmem:[#allocation2 + $0x200] sm:$0xff]
    %v237 = vld [vmem:[#allocation2 + $0x208] sm:$0xff]
    %v238 = vld [vmem:[#allocation2 + $0x210] sm:$0xff]
    %v239 = vld [vmem:[#allocation2 + $0x218] sm:$0xff]
    %v240 = vld [vmem:[#allocation2 + $0x220] sm:$0xff]
    %v241 = vld [vmem:[#allocation2 + $0x228] sm:$0xff]
    %v242 = vld [vmem:[#allocation2 + $0x230] sm:$0xff]
    %v243 = vld [vmem:[#allocation2 + $0x238] sm:$0xff]
    %v244 = vld [vmem:[#allocation2 + $0x240] sm:$0xff]
    %v245 = vld [vmem:[#allocation2 + $0x248] sm:$0xff]
    %v246 = vld [vmem:[#allocation2 + $0x250] sm:$0xff]
    %v247 = vld [vmem:[#allocation2 + $0x258] sm:$0xff]
    %v248 = vld [vmem:[#allocation2 + $0x260] sm:$0xff]
    %v249 = vld [vmem:[#allocation2 + $0x268] sm:$0xff]
    %v250 = vld [vmem:[#allocation2 + $0x270] sm:$0xff]
    %v251 = vld [vmem:[#allocation2 + $0x278] sm:$0xff]
    %v252 = vld [vmem:[#allocation2 + $0x280] sm:$0xff]
    %v253 = vld [vmem:[#allocation2 + $0x288] sm:$0xff]
    %v254 = vld [vmem:[#allocation2 + $0x290] sm:$0xff]
    %v255 = vld [vmem:[#allocation2 + $0x298] sm:$0xff]
    %v256 = vld [vmem:[#allocation2 + $0x2a0] sm:$0xff]
    %v257 = vld [vmem:[#allocation2 + $0x2a8] sm:$0xff]
    %v258 = vld [vmem:[#allocation2 + $0x2b0] sm:$0xff]
    %v259 = vld [vmem:[#allocation2 + $0x2b8] sm:$0xff]
    %v260 = vld [vmem:[#allocation2 + $0x2c0] sm:$0xff]
    %v261 = vld [vmem:[#allocation2 + $0x2c8] sm:$0xff]
    %v262 = vld [vmem:[#allocation2 + $0x2d0] sm:$0xff]
    %v263 = vld [vmem:[#allocation2 + $0x2d8] sm:$0xff]
    %v264 = vld [vmem:[#allocation2 + $0x2e0] sm:$0xff]
    %v265 = vld [vmem:[#allocation2 + $0x2e8] sm:$0xff]
    %v266 = vld [vmem:[#allocation2 + $0x2f0] sm:$0xff]
    %v267 = vld [vmem:[#allocation2 + $0x2f8] sm:$0xff]
    %v268 = vld [vmem:[#allocation2 + $0x300] sm:$0xff]
    %v269 = vld [vmem:[#allocation2 + $0x308] sm:$0xff]
    %v270 = vld [vmem:[#allocation2 + $0x310] sm:$0xff]
    %v271 = vld [vmem:[#allocation2 + $0x318] sm:$0xff]
    %v272 = vld [vmem:[#allocation2 + $0x320] sm:$0xff]
    %v273 = vld [vmem:[#allocation2 + $0x328] sm:$0xff]
    %v274 = vld [vmem:[#allocation2 + $0x330] sm:$0xff]
    %v275 = vld [vmem:[#allocation2 + $0x338] sm:$0xff]
    %v276 = vld [vmem:[#allocation2 + $0x340] sm:$0xff]
    %v277 = vld [vmem:[#allocation2 + $0x348] sm:$0xff]
    %v278 = vld [vmem:[#allocation2 + $0x350] sm:$0xff]
    %v279 = vld [vmem:[#allocation2 + $0x358] sm:$0xff]
    %v280 = vld [vmem:[#allocation2 + $0x360] sm:$0xff]
    %v281 = vld [vmem:[#allocation2 + $0x368] sm:$0xff]
    %v282 = vld [vmem:[#allocation2 + $0x370] sm:$0xff]
    %v283 = vld [vmem:[#allocation2 + $0x378] sm:$0xff]
    %v284 = vld [vmem:[#allocation2 + $0x380] sm:$0xff]
    %v285 = vld [vmem:[#allocation2 + $0x388] sm:$0xff]
    %v286 = vld [vmem:[#allocation2 + $0x390] sm:$0xff]
    %v287 = vld [vmem:[#allocation2 + $0x398] sm:$0xff]
    %v288 = vld [vmem:[#allocation2 + $0x3a0] sm:$0xff]
    %v289 = vld [vmem:[#allocation2 + $0x3a8] sm:$0xff]
    %v290 = vld [vmem:[#allocation2 + $0x3b0] sm:$0xff]
    %v291 = vld [vmem:[#allocation2 + $0x3b8] sm:$0xff]
    %v292 = vld [vmem:[#allocation2 + $0x3c0] sm:$0xff]
    %v293 = vld [vmem:[#allocation2 + $0x3c8] sm:$0xff]
    %v294 = vld [vmem:[#allocation2 + $0x3d0] sm:$0xff]
    %v295 = vld [vmem:[#allocation2 + $0x3d8] sm:$0xff]
    %v296 = vld [vmem:[#allocation2 + $0x3e0] sm:$0xff]
    %v297 = vld [vmem:[#allocation2 + $0x3e8] sm:$0xff]
    %v298 = vld [vmem:[#allocation2 + $0x3f0] sm:$0xff]
    %v299 = vld [vmem:[#allocation2 + $0x3f8] sm:$0xff]
    %v300 = vld [vmem:[%s3] sm:$0x3]
    %v302 = vlaneseq
    %v303 = vshrl.u32 %v302, 7
    %v304 = vsub.s32 0, %v303
    %v305 = vrot.slane %v300, %v304
    %v306 = vlaneseq
    %v307 = vshrl.u32 %v306, 7
    %v308 = vsub.s32 1, %v307
    %v309 = vrot.slane %v300, %v308
    %v440 = vunpack.c.l.b16 %v172
    %v441 = vunpack.c.h.b16 %v172
    %v442 = vunpack.c.l.b16 %v173
    %v443 = vunpack.c.h.b16 %v173
    %v444 = vunpack.c.l.b16 %v174
    %v445 = vunpack.c.h.b16 %v174
    %v446 = vunpack.c.l.b16 %v175
    %v447 = vunpack.c.h.b16 %v175
    %v448 = vunpack.c.l.b16 %v176
    %v449 = vunpack.c.h.b16 %v176
    %v450 = vunpack.c.l.b16 %v177
    %v451 = vunpack.c.h.b16 %v177
    %v452 = vunpack.c.l.b16 %v178
    %v453 = vunpack.c.h.b16 %v178
    %v454 = vunpack.c.l.b16 %v179
    %v455 = vunpack.c.h.b16 %v179
    %v456 = vunpack.c.l.b16 %v180
    %v457 = vunpack.c.h.b16 %v180
    %v458 = vunpack.c.l.b16 %v181
    %v459 = vunpack.c.h.b16 %v181
    %v460 = vunpack.c.l.b16 %v182
    %v461 = vunpack.c.h.b16 %v182
    %v462 = vunpack.c.l.b16 %v183
    %v463 = vunpack.c.h.b16 %v183
    %v464 = vunpack.c.l.b16 %v184
    %v465 = vunpack.c.h.b16 %v184
    %v466 = vunpack.c.l.b16 %v185
    %v467 = vunpack.c.h.b16 %v185
    %v468 = vunpack.c.l.b16 %v186
    %v469 = vunpack.c.h.b16 %v186
    %v470 = vunpack.c.l.b16 %v187
    %v471 = vunpack.c.h.b16 %v187
    %v472 = vunpack.c.l.b16 %v188
    %v473 = vunpack.c.h.b16 %v188
    %v474 = vunpack.c.l.b16 %v189
    %v475 = vunpack.c.h.b16 %v189
    %v476 = vunpack.c.l.b16 %v190
    %v477 = vunpack.c.h.b16 %v190
    %v478 = vunpack.c.l.b16 %v191
    %v479 = vunpack.c.h.b16 %v191
    %v480 = vunpack.c.l.b16 %v192
    %v481 = vunpack.c.h.b16 %v192
    %v482 = vunpack.c.l.b16 %v193
    %v483 = vunpack.c.h.b16 %v193
    %v484 = vunpack.c.l.b16 %v194
    %v485 = vunpack.c.h.b16 %v194
    %v486 = vunpack.c.l.b16 %v195
    %v487 = vunpack.c.h.b16 %v195
    %v488 = vunpack.c.l.b16 %v196
    %v489 = vunpack.c.h.b16 %v196
    %v490 = vunpack.c.l.b16 %v197
    %v491 = vunpack.c.h.b16 %v197
    %v492 = vunpack.c.l.b16 %v198
    %v493 = vunpack.c.h.b16 %v198
    %v494 = vunpack.c.l.b16 %v199
    %v495 = vunpack.c.h.b16 %v199
    %v496 = vunpack.c.l.b16 %v200
    %v497 = vunpack.c.h.b16 %v200
    %v498 = vunpack.c.l.b16 %v201
    %v499 = vunpack.c.h.b16 %v201
    %v500 = vunpack.c.l.b16 %v202
    %v501 = vunpack.c.h.b16 %v202
    %v502 = vunpack.c.l.b16 %v203
    %v503 = vunpack.c.h.b16 %v203
    %v504 = vunpack.c.l.b16 %v204
    %v505 = vunpack.c.h.b16 %v204
    %v506 = vunpack.c.l.b16 %v205
    %v507 = vunpack.c.h.b16 %v205
    %v508 = vunpack.c.l.b16 %v206
    %v509 = vunpack.c.h.b16 %v206
    %v510 = vunpack.c.l.b16 %v207
    %v511 = vunpack.c.h.b16 %v207
    %v512 = vunpack.c.l.b16 %v208
    %v513 = vunpack.c.h.b16 %v208
    %v514 = vunpack.c.l.b16 %v209
    %v515 = vunpack.c.h.b16 %v209
    %v516 = vunpack.c.l.b16 %v210
    %v517 = vunpack.c.h.b16 %v210
    %v518 = vunpack.c.l.b16 %v211
    %v519 = vunpack.c.h.b16 %v211
    %v520 = vunpack.c.l.b16 %v212
    %v521 = vunpack.c.h.b16 %v212
    %v522 = vunpack.c.l.b16 %v213
    %v523 = vunpack.c.h.b16 %v213
    %v524 = vunpack.c.l.b16 %v214
    %v525 = vunpack.c.h.b16 %v214
    %v526 = vunpack.c.l.b16 %v215
    %v527 = vunpack.c.h.b16 %v215
    %v528 = vunpack.c.l.b16 %v216
    %v529 = vunpack.c.h.b16 %v216
    %v530 = vunpack.c.l.b16 %v217
    %v531 = vunpack.c.h.b16 %v217
    %v532 = vunpack.c.l.b16 %v218
    %v533 = vunpack.c.h.b16 %v218
    %v534 = vunpack.c.l.b16 %v219
    %v535 = vunpack.c.h.b16 %v219
    %v536 = vunpack.c.l.b16 %v220
    %v537 = vunpack.c.h.b16 %v220
    %v538 = vunpack.c.l.b16 %v221
    %v539 = vunpack.c.h.b16 %v221
    %v540 = vunpack.c.l.b16 %v222
    %v541 = vunpack.c.h.b16 %v222
    %v542 = vunpack.c.l.b16 %v223
    %v543 = vunpack.c.h.b16 %v223
    %v544 = vunpack.c.l.b16 %v224
    %v545 = vunpack.c.h.b16 %v224
    %v546 = vunpack.c.l.b16 %v225
    %v547 = vunpack.c.h.b16 %v225
    %v548 = vunpack.c.l.b16 %v226
    %v549 = vunpack.c.h.b16 %v226
    %v550 = vunpack.c.l.b16 %v227
    %v551 = vunpack.c.h.b16 %v227
    %v552 = vunpack.c.l.b16 %v228
    %v553 = vunpack.c.h.b16 %v228
    %v554 = vunpack.c.l.b16 %v229
    %v555 = vunpack.c.h.b16 %v229
    %v556 = vunpack.c.l.b16 %v230
    %v557 = vunpack.c.h.b16 %v230
    %v558 = vunpack.c.l.b16 %v231
    %v559 = vunpack.c.h.b16 %v231
    %v560 = vunpack.c.l.b16 %v232
    %v561 = vunpack.c.h.b16 %v232
    %v562 = vunpack.c.l.b16 %v233
    %v563 = vunpack.c.h.b16 %v233
    %v564 = vunpack.c.l.b16 %v234
    %v565 = vunpack.c.h.b16 %v234
    %v566 = vunpack.c.l.b16 %v235
    %v567 = vunpack.c.h.b16 %v235
    %v568 = vunpack.c.l.b16 %v236
    %v569 = vunpack.c.h.b16 %v236
    %v570 = vunpack.c.l.b16 %v237
    %v571 = vunpack.c.h.b16 %v237
    %v572 = vunpack.c.l.b16 %v238
    %v573 = vunpack.c.h.b16 %v238
    %v574 = vunpack.c.l.b16 %v239
    %v575 = vunpack.c.h.b16 %v239
    %v576 = vunpack.c.l.b16 %v240
    %v577 = vunpack.c.h.b16 %v240
    %v578 = vunpack.c.l.b16 %v241
    %v579 = vunpack.c.h.b16 %v241
    %v580 = vunpack.c.l.b16 %v242
    %v581 = vunpack.c.h.b16 %v242
    %v582 = vunpack.c.l.b16 %v243
    %v583 = vunpack.c.h.b16 %v243
    %v584 = vunpack.c.l.b16 %v244
    %v585 = vunpack.c.h.b16 %v244
    %v586 = vunpack.c.l.b16 %v245
    %v587 = vunpack.c.h.b16 %v245
    %v588 = vunpack.c.l.b16 %v246
    %v589 = vunpack.c.h.b16 %v246
    %v590 = vunpack.c.l.b16 %v247
    %v591 = vunpack.c.h.b16 %v247
    %v592 = vunpack.c.l.b16 %v248
    %v593 = vunpack.c.h.b16 %v248
    %v594 = vunpack.c.l.b16 %v249
    %v595 = vunpack.c.h.b16 %v249
    %v596 = vunpack.c.l.b16 %v250
    %v597 = vunpack.c.h.b16 %v250
    %v598 = vunpack.c.l.b16 %v251
    %v599 = vunpack.c.h.b16 %v251
    %v600 = vunpack.c.l.b16 %v252
    %v601 = vunpack.c.h.b16 %v252
    %v602 = vunpack.c.l.b16 %v253
    %v603 = vunpack.c.h.b16 %v253
    %v604 = vunpack.c.l.b16 %v254
    %v605 = vunpack.c.h.b16 %v254
    %v606 = vunpack.c.l.b16 %v255
    %v607 = vunpack.c.h.b16 %v255
    %v608 = vunpack.c.l.b16 %v256
    %v609 = vunpack.c.h.b16 %v256
    %v610 = vunpack.c.l.b16 %v257
    %v611 = vunpack.c.h.b16 %v257
    %v612 = vunpack.c.l.b16 %v258
    %v613 = vunpack.c.h.b16 %v258
    %v614 = vunpack.c.l.b16 %v259
    %v615 = vunpack.c.h.b16 %v259
    %v616 = vunpack.c.l.b16 %v260
    %v617 = vunpack.c.h.b16 %v260
    %v618 = vunpack.c.l.b16 %v261
    %v619 = vunpack.c.h.b16 %v261
    %v620 = vunpack.c.l.b16 %v262
    %v621 = vunpack.c.h.b16 %v262
    %v622 = vunpack.c.l.b16 %v263
    %v623 = vunpack.c.h.b16 %v263
    %v624 = vunpack.c.l.b16 %v264
    %v625 = vunpack.c.h.b16 %v264
    %v626 = vunpack.c.l.b16 %v265
    %v627 = vunpack.c.h.b16 %v265
    %v628 = vunpack.c.l.b16 %v266
    %v629 = vunpack.c.h.b16 %v266
    %v630 = vunpack.c.l.b16 %v267
    %v631 = vunpack.c.h.b16 %v267
    %v632 = vunpack.c.l.b16 %v268
    %v633 = vunpack.c.h.b16 %v268
    %v634 = vunpack.c.l.b16 %v269
    %v635 = vunpack.c.h.b16 %v269
    %v636 = vunpack.c.l.b16 %v270
    %v637 = vunpack.c.h.b16 %v270
    %v638 = vunpack.c.l.b16 %v271
    %v639 = vunpack.c.h.b16 %v271
    %v640 = vunpack.c.l.b16 %v272
    %v641 = vunpack.c.h.b16 %v272
    %v642 = vunpack.c.l.b16 %v273
    %v643 = vunpack.c.h.b16 %v273
    %v644 = vunpack.c.l.b16 %v274
    %v645 = vunpack.c.h.b16 %v274
    %v646 = vunpack.c.l.b16 %v275
    %v647 = vunpack.c.h.b16 %v275
    %v648 = vunpack.c.l.b16 %v276
    %v649 = vunpack.c.h.b16 %v276
    %v650 = vunpack.c.l.b16 %v277
    %v651 = vunpack.c.h.b16 %v277
    %v652 = vunpack.c.l.b16 %v278
    %v653 = vunpack.c.h.b16 %v278
    %v654 = vunpack.c.l.b16 %v279
    %v655 = vunpack.c.h.b16 %v279
    %v656 = vunpack.c.l.b16 %v280
    %v657 = vunpack.c.h.b16 %v280
    %v658 = vunpack.c.l.b16 %v281
    %v659 = vunpack.c.h.b16 %v281
    %v660 = vunpack.c.l.b16 %v282
    %v661 = vunpack.c.h.b16 %v282
    %v662 = vunpack.c.l.b16 %v283
    %v663 = vunpack.c.h.b16 %v283
    %v664 = vunpack.c.l.b16 %v284
    %v665 = vunpack.c.h.b16 %v284
    %v666 = vunpack.c.l.b16 %v285
    %v667 = vunpack.c.h.b16 %v285
    %v668 = vunpack.c.l.b16 %v286
    %v669 = vunpack.c.h.b16 %v286
    %v670 = vunpack.c.l.b16 %v287
    %v671 = vunpack.c.h.b16 %v287
    %v672 = vunpack.c.l.b16 %v288
    %v673 = vunpack.c.h.b16 %v288
    %v674 = vunpack.c.l.b16 %v289
    %v675 = vunpack.c.h.b16 %v289
    %v676 = vunpack.c.l.b16 %v290
    %v677 = vunpack.c.h.b16 %v290
    %v678 = vunpack.c.l.b16 %v291
    %v679 = vunpack.c.h.b16 %v291
    %v680 = vunpack.c.l.b16 %v292
    %v681 = vunpack.c.h.b16 %v292
    %v682 = vunpack.c.l.b16 %v293
    %v683 = vunpack.c.h.b16 %v293
    %v684 = vunpack.c.l.b16 %v294
    %v685 = vunpack.c.h.b16 %v294
    %v686 = vunpack.c.l.b16 %v295
    %v687 = vunpack.c.h.b16 %v295
    %v688 = vunpack.c.l.b16 %v296
    %v689 = vunpack.c.h.b16 %v296
    %v690 = vunpack.c.l.b16 %v297
    %v691 = vunpack.c.h.b16 %v297
    %v692 = vunpack.c.l.b16 %v298
    %v693 = vunpack.c.h.b16 %v298
    %v694 = vunpack.c.l.b16 %v299
    %v695 = vunpack.c.h.b16 %v299
    %v696 = vpack.c.b16 %v442, %v440
    %v697 = vpack.c.b16 %v443, %v441
    %v698 = vpack.c.b16 %v446, %v444
    %v699 = vpack.c.b16 %v447, %v445
    %v700 = vpack.c.b16 %v450, %v448
    %v701 = vpack.c.b16 %v451, %v449
    %v702 = vpack.c.b16 %v454, %v452
    %v703 = vpack.c.b16 %v455, %v453
    %v704 = vpack.c.b16 %v458, %v456
    %v705 = vpack.c.b16 %v459, %v457
    %v706 = vpack.c.b16 %v462, %v460
    %v707 = vpack.c.b16 %v463, %v461
    %v708 = vpack.c.b16 %v466, %v464
    %v709 = vpack.c.b16 %v467, %v465
    %v710 = vpack.c.b16 %v470, %v468
    %v711 = vpack.c.b16 %v471, %v469
    %v712 = vpack.c.b16 %v474, %v472
    %v713 = vpack.c.b16 %v475, %v473
    %v714 = vpack.c.b16 %v478, %v476
    %v715 = vpack.c.b16 %v479, %v477
    %v716 = vpack.c.b16 %v482, %v480
    %v717 = vpack.c.b16 %v483, %v481
    %v718 = vpack.c.b16 %v486, %v484
    %v719 = vpack.c.b16 %v487, %v485
    %v720 = vpack.c.b16 %v490, %v488
    %v721 = vpack.c.b16 %v491, %v489
    %v722 = vpack.c.b16 %v494, %v492
    %v723 = vpack.c.b16 %v495, %v493
    %v724 = vpack.c.b16 %v498, %v496
    %v725 = vpack.c.b16 %v499, %v497
    %v726 = vpack.c.b16 %v502, %v500
    %v727 = vpack.c.b16 %v503, %v501
    %v728 = vpack.c.b16 %v506, %v504
    %v729 = vpack.c.b16 %v507, %v505
    %v730 = vpack.c.b16 %v510, %v508
    %v731 = vpack.c.b16 %v511, %v509
    %v732 = vpack.c.b16 %v514, %v512
    %v733 = vpack.c.b16 %v515, %v513
    %v734 = vpack.c.b16 %v518, %v516
    %v735 = vpack.c.b16 %v519, %v517
    %v736 = vpack.c.b16 %v522, %v520
    %v737 = vpack.c.b16 %v523, %v521
    %v738 = vpack.c.b16 %v526, %v524
    %v739 = vpack.c.b16 %v527, %v525
    %v740 = vpack.c.b16 %v530, %v528
    %v741 = vpack.c.b16 %v531, %v529
    %v742 = vpack.c.b16 %v534, %v532
    %v743 = vpack.c.b16 %v535, %v533
    %v744 = vpack.c.b16 %v538, %v536
    %v745 = vpack.c.b16 %v539, %v537
    %v746 = vpack.c.b16 %v542, %v540
    %v747 = vpack.c.b16 %v543, %v541
    %v748 = vpack.c.b16 %v546, %v544
    %v749 = vpack.c.b16 %v547, %v545
    %v750 = vpack.c.b16 %v550, %v548
    %v751 = vpack.c.b16 %v551, %v549
    %v752 = vpack.c.b16 %v554, %v552
    %v753 = vpack.c.b16 %v555, %v553
    %v754 = vpack.c.b16 %v558, %v556
    %v755 = vpack.c.b16 %v559, %v557
    %v756 = vpack.c.b16 %v562, %v560
    %v757 = vpack.c.b16 %v563, %v561
    %v758 = vpack.c.b16 %v566, %v564
    %v759 = vpack.c.b16 %v567, %v565
    %v760 = vpack.c.b16 %v570, %v568
    %v761 = vpack.c.b16 %v571, %v569
    %v762 = vpack.c.b16 %v574, %v572
    %v763 = vpack.c.b16 %v575, %v573
    %v764 = vpack.c.b16 %v578, %v576
    %v765 = vpack.c.b16 %v579, %v577
    %v766 = vpack.c.b16 %v582, %v580
    %v767 = vpack.c.b16 %v583, %v581
    %v768 = vpack.c.b16 %v586, %v584
    %v769 = vpack.c.b16 %v587, %v585
    %v770 = vpack.c.b16 %v590, %v588
    %v771 = vpack.c.b16 %v591, %v589
    %v772 = vpack.c.b16 %v594, %v592
    %v773 = vpack.c.b16 %v595, %v593
    %v774 = vpack.c.b16 %v598, %v596
    %v775 = vpack.c.b16 %v599, %v597
    %v776 = vpack.c.b16 %v602, %v600
    %v777 = vpack.c.b16 %v603, %v601
    %v778 = vpack.c.b16 %v606, %v604
    %v779 = vpack.c.b16 %v607, %v605
    %v780 = vpack.c.b16 %v610, %v608
    %v781 = vpack.c.b16 %v611, %v609
    %v782 = vpack.c.b16 %v614, %v612
    %v783 = vpack.c.b16 %v615, %v613
    %v784 = vpack.c.b16 %v618, %v616
    %v785 = vpack.c.b16 %v619, %v617
    %v786 = vpack.c.b16 %v622, %v620
    %v787 = vpack.c.b16 %v623, %v621
    %v788 = vpack.c.b16 %v626, %v624
    %v789 = vpack.c.b16 %v627, %v625
    %v790 = vpack.c.b16 %v630, %v628
    %v791 = vpack.c.b16 %v631, %v629
    %v792 = vpack.c.b16 %v634, %v632
    %v793 = vpack.c.b16 %v635, %v633
    %v794 = vpack.c.b16 %v638, %v636
    %v795 = vpack.c.b16 %v639, %v637
    %v796 = vpack.c.b16 %v642, %v640
    %v797 = vpack.c.b16 %v643, %v641
    %v798 = vpack.c.b16 %v646, %v644
    %v799 = vpack.c.b16 %v647, %v645
    %v800 = vpack.c.b16 %v650, %v648
    %v801 = vpack.c.b16 %v651, %v649
    %v802 = vpack.c.b16 %v654, %v652
    %v803 = vpack.c.b16 %v655, %v653
    %v804 = vpack.c.b16 %v658, %v656
    %v805 = vpack.c.b16 %v659, %v657
    %v806 = vpack.c.b16 %v662, %v660
    %v807 = vpack.c.b16 %v663, %v661
    %v808 = vpack.c.b16 %v666, %v664
    %v809 = vpack.c.b16 %v667, %v665
    %v810 = vpack.c.b16 %v670, %v668
    %v811 = vpack.c.b16 %v671, %v669
    %v812 = vpack.c.b16 %v674, %v672
    %v813 = vpack.c.b16 %v675, %v673
    %v814 = vpack.c.b16 %v678, %v676
    %v815 = vpack.c.b16 %v679, %v677
    %v816 = vpack.c.b16 %v682, %v680
    %v817 = vpack.c.b16 %v683, %v681
    %v818 = vpack.c.b16 %v686, %v684
    %v819 = vpack.c.b16 %v687, %v685
    %v820 = vpack.c.b16 %v690, %v688
    %v821 = vpack.c.b16 %v691, %v689
    %v822 = vpack.c.b16 %v694, %v692
    %v823 = vpack.c.b16 %v695, %v693
    %952 = vmatprep.subr.bf16.mxu0 %v697
    %953 = vmatpush1.bf16.msra.mxu0 %v696
    %954 = vmatprep.subr.bf16.mxu0 %v699
    %955 = vmatpush1.bf16.msra.mxu0 %v698
    %956 = vmatprep.subr.bf16.mxu0 %v701
    %957 = vmatpush1.bf16.msra.mxu0 %v700
    %958 = vmatprep.subr.bf16.mxu0 %v703
    %959 = vmatpush1.bf16.msra.mxu0 %v702
    %960 = vmatprep.subr.bf16.mxu0 %v705
    %961 = vmatpush1.bf16.msra.mxu0 %v704
    %962 = vmatprep.subr.bf16.mxu0 %v707
    %963 = vmatpush1.bf16.msra.mxu0 %v706
    %964 = vmatprep.subr.bf16.mxu0 %v709
    %965 = vmatpush1.bf16.msra.mxu0 %v708
    %966 = vmatprep.subr.bf16.mxu0 %v711
    %967 = vmatpush1.bf16.msra.mxu0 %v710
    %968 = vmatprep.subr.bf16.mxu0 %v713
    %969 = vmatpush1.bf16.msra.mxu0 %v712
    %970 = vmatprep.subr.bf16.mxu0 %v715
    %971 = vmatpush1.bf16.msra.mxu0 %v714
    %972 = vmatprep.subr.bf16.mxu0 %v717
    %973 = vmatpush1.bf16.msra.mxu0 %v716
    %974 = vmatprep.subr.bf16.mxu0 %v719
    %975 = vmatpush1.bf16.msra.mxu0 %v718
    %976 = vmatprep.subr.bf16.mxu0 %v721
    %977 = vmatpush1.bf16.msra.mxu0 %v720
    %978 = vmatprep.subr.bf16.mxu0 %v723
    %979 = vmatpush1.bf16.msra.mxu0 %v722
    %980 = vmatprep.subr.bf16.mxu0 %v725
    %981 = vmatpush1.bf16.msra.mxu0 %v724
    %982 = vmatprep.subr.bf16.mxu0 %v727
    %983 = vmatpush1.bf16.msra.mxu0 %v726
    %984 = vmatprep.mubr.bf16.mxu0 %v165
    %985 = vmatmul.mubr.bf16.gmra.mrb[0].mxu0 %v164
    %v986 = vpop.f32.mrb[0].mxu0
    %v987 = vadd.f32 %v305, %v986
    %v988 = vpop.f32.mrb[0].mxu0
    %v989 = vadd.f32 %v309, %v988
    %v990 = vpop.f32.mrb[0].mxu0
    %v991 = vpop.f32.mrb[0].mxu0
    %992 = vdwg.mxu0
    %993 = vmatprep.subr.bf16.mxu0 %v729
    %994 = vmatpush1.bf16.msra.mxu0 %v728
    %995 = vmatprep.subr.bf16.mxu0 %v731
    %996 = vmatpush1.bf16.msra.mxu0 %v730
    %997 = vmatprep.subr.bf16.mxu0 %v733
    %998 = vmatpush1.bf16.msra.mxu0 %v732
    %999 = vmatprep.subr.bf16.mxu0 %v735
    %1000 = vmatpush1.bf16.msra.mxu0 %v734
    %1001 = vmatprep.subr.bf16.mxu0 %v737
    %1002 = vmatpush1.bf16.msra.mxu0 %v736
    %1003 = vmatprep.subr.bf16.mxu0 %v739
    %1004 = vmatpush1.bf16.msra.mxu0 %v738
    %1005 = vmatprep.subr.bf16.mxu0 %v741
    %1006 = vmatpush1.bf16.msra.mxu0 %v740
    %1007 = vmatprep.subr.bf16.mxu0 %v743
    %1008 = vmatpush1.bf16.msra.mxu0 %v742
    %1009 = vmatprep.subr.bf16.mxu0 %v745
    %1010 = vmatpush1.bf16.msra.mxu0 %v744
    %1011 = vmatprep.subr.bf16.mxu0 %v747
    %1012 = vmatpush1.bf16.msra.mxu0 %v746
    %1013 = vmatprep.subr.bf16.mxu0 %v749
    %1014 = vmatpush1.bf16.msra.mxu0 %v748
    %1015 = vmatprep.subr.bf16.mxu0 %v751
    %1016 = vmatpush1.bf16.msra.mxu0 %v750
    %1017 = vmatprep.subr.bf16.mxu0 %v753
    %1018 = vmatpush1.bf16.msra.mxu0 %v752
    %1019 = vmatprep.subr.bf16.mxu0 %v755
    %1020 = vmatpush1.bf16.msra.mxu0 %v754
    %1021 = vmatprep.subr.bf16.mxu0 %v757
    %1022 = vmatpush1.bf16.msra.mxu0 %v756
    %1023 = vmatprep.subr.bf16.mxu0 %v759
    %1024 = vmatpush1.bf16.msra.mxu0 %v758
    %1025 = vmatprep.mubr.bf16.mxu0 %v167
    %1026 = vmatmul.mubr.bf16.gmra.mrb[0].mxu0 %v166
    %v1027 = vpop.f32.mrb[0].mxu0
    %v1028 = vadd.f32 %v987, %v1027
    %v1029 = vpop.f32.mrb[0].mxu0
    %v1030 = vadd.f32 %v989, %v1029
    %v1031 = vpop.f32.mrb[0].mxu0
    %v1032 = vpop.f32.mrb[0].mxu0
    %1033 = vdwg.mxu0
    %1034 = vmatprep.subr.bf16.mxu0 %v761
    %1035 = vmatpush1.bf16.msra.mxu0 %v760
    %1036 = vmatprep.subr.bf16.mxu0 %v763
    %1037 = vmatpush1.bf16.msra.mxu0 %v762
    %1038 = vmatprep.subr.bf16.mxu0 %v765
    %1039 = vmatpush1.bf16.msra.mxu0 %v764
    %1040 = vmatprep.subr.bf16.mxu0 %v767
    %1041 = vmatpush1.bf16.msra.mxu0 %v766
    %1042 = vmatprep.subr.bf16.mxu0 %v769
    %1043 = vmatpush1.bf16.msra.mxu0 %v768
    %1044 = vmatprep.subr.bf16.mxu0 %v771
    %1045 = vmatpush1.bf16.msra.mxu0 %v770
    %1046 = vmatprep.subr.bf16.mxu0 %v773
    %1047 = vmatpush1.bf16.msra.mxu0 %v772
    %1048 = vmatprep.subr.bf16.mxu0 %v775
    %1049 = vmatpush1.bf16.msra.mxu0 %v774
    %1050 = vmatprep.subr.bf16.mxu0 %v777
    %1051 = vmatpush1.bf16.msra.mxu0 %v776
    %1052 = vmatprep.subr.bf16.mxu0 %v779
    %1053 = vmatpush1.bf16.msra.mxu0 %v778
    %1054 = vmatprep.subr.bf16.mxu0 %v781
    %1055 = vmatpush1.bf16.msra.mxu0 %v780
    %1056 = vmatprep.subr.bf16.mxu0 %v783
    %1057 = vmatpush1.bf16.msra.mxu0 %v782
    %1058 = vmatprep.subr.bf16.mxu0 %v785
    %1059 = vmatpush1.bf16.msra.mxu0 %v784
    %1060 = vmatprep.subr.bf16.mxu0 %v787
    %1061 = vmatpush1.bf16.msra.mxu0 %v786
    %1062 = vmatprep.subr.bf16.mxu0 %v789
    %1063 = vmatpush1.bf16.msra.mxu0 %v788
    %1064 = vmatprep.subr.bf16.mxu0 %v791
    %1065 = vmatpush1.bf16.msra.mxu0 %v790
    %1066 = vmatprep.mubr.bf16.mxu0 %v169
    %1067 = vmatmul.mubr.bf16.gmra.mrb[0].mxu0 %v168
    %v1068 = vpop.f32.mrb[0].mxu0
    %v1069 = vadd.f32 %v1028, %v1068
    %v1070 = vpop.f32.mrb[0].mxu0
    %v1071 = vadd.f32 %v1030, %v1070
    %v1072 = vpop.f32.mrb[0].mxu0
    %v1073 = vpop.f32.mrb[0].mxu0
    %1074 = vdwg.mxu0
    %1075 = vmatprep.subr.bf16.mxu0 %v793
    %1076 = vmatpush1.bf16.msra.mxu0 %v792
    %1077 = vmatprep.subr.bf16.mxu0 %v795
    %1078 = vmatpush1.bf16.msra.mxu0 %v794
    %1079 = vmatprep.subr.bf16.mxu0 %v797
    %1080 = vmatpush1.bf16.msra.mxu0 %v796
    %1081 = vmatprep.subr.bf16.mxu0 %v799
    %1082 = vmatpush1.bf16.msra.mxu0 %v798
    %1083 = vmatprep.subr.bf16.mxu0 %v801
    %1084 = vmatpush1.bf16.msra.mxu0 %v800
    %1085 = vmatprep.subr.bf16.mxu0 %v803
    %1086 = vmatpush1.bf16.msra.mxu0 %v802
    %1087 = vmatprep.subr.bf16.mxu0 %v805
    %1088 = vmatpush1.bf16.msra.mxu0 %v804
    %1089 = vmatprep.subr.bf16.mxu0 %v807
    %1090 = vmatpush1.bf16.msra.mxu0 %v806
    %1091 = vmatprep.subr.bf16.mxu0 %v809
    %1092 = vmatpush1.bf16.msra.mxu0 %v808
    %1093 = vmatprep.subr.bf16.mxu0 %v811
    %1094 = vmatpush1.bf16.msra.mxu0 %v810
    %1095 = vmatprep.subr.bf16.mxu0 %v813
    %1096 = vmatpush1.bf16.msra.mxu0 %v812
    %1097 = vmatprep.subr.bf16.mxu0 %v815
    %1098 = vmatpush1.bf16.msra.mxu0 %v814
    %1099 = vmatprep.subr.bf16.mxu0 %v817
    %1100 = vmatpush1.bf16.msra.mxu0 %v816
    %1101 = vmatprep.subr.bf16.mxu0 %v819
    %1102 = vmatpush1.bf16.msra.mxu0 %v818
    %1103 = vmatprep.subr.bf16.mxu0 %v821
    %1104 = vmatpush1.bf16.msra.mxu0 %v820
    %1105 = vmatprep.subr.bf16.mxu0 %v823
    %1106 = vmatpush1.bf16.msra.mxu0 %v822
    %1107 = vmatprep.mubr.bf16.mxu0 %v171
    %1108 = vmatmul.mubr.bf16.gmra.mrb[0].mxu0 %v170
    %v1109 = vpop.f32.mrb[0].mxu0
    %v1110 = vadd.f32 %v1069, %v1109
    %v1111 = vpop.f32.mrb[0].mxu0
    %v1112 = vadd.f32 %v1071, %v1111
    %v1113 = vpop.f32.mrb[0].mxu0
    %v1114 = vpop.f32.mrb[0].mxu0
    %1115 = vdwg.mxu0
    %v1116 = vmax.f32 %v1110, 0.0
    %v1117 = vmax.f32 %v1112, 0.0
    %v1118 = vpack.c.bf16 %v1116, %v1116
    %v1119 = vpack.c.bf16 %v1117, %v1117
    %v1120 = vld [vmem:[%s4] sm:$0xf]
    %v1121 = vld [vmem:[%s4 + $0x4] sm:$0xf]
    %v1122 = vld [vmem:[%s4 + $0x8] sm:$0xf]
    %v1123 = vld [vmem:[%s4 + $0xc] sm:$0xf]
    %v1124 = vld [vmem:[%s4 + $0x10] sm:$0xf]
    %v1125 = vld [vmem:[%s4 + $0x14] sm:$0xf]
    %v1126 = vld [vmem:[%s4 + $0x18] sm:$0xf]
    %v1127 = vld [vmem:[%s4 + $0x1c] sm:$0xf]
    %v1128 = vld [vmem:[%s4 + $0x20] sm:$0xf]
    %v1129 = vld [vmem:[%s4 + $0x24] sm:$0xf]
    %v1130 = vld [vmem:[%s4 + $0x28] sm:$0xf]
    %v1131 = vld [vmem:[%s4 + $0x2c] sm:$0xf]
    %v1132 = vld [vmem:[%s4 + $0x30] sm:$0xf]
    %v1133 = vld [vmem:[%s4 + $0x34] sm:$0xf]
    %v1134 = vld [vmem:[%s4 + $0x38] sm:$0xf]
    %v1135 = vld [vmem:[%s4 + $0x3c] sm:$0xf]
    %v1136 = vld [vmem:[%s4 + $0x40] sm:$0xf]
    %v1137 = vld [vmem:[%s4 + $0x44] sm:$0xf]
    %v1138 = vld [vmem:[%s4 + $0x48] sm:$0xf]
    %v1139 = vld [vmem:[%s4 + $0x4c] sm:$0xf]
    %v1140 = vld [vmem:[%s4 + $0x50] sm:$0xf]
    %v1141 = vld [vmem:[%s4 + $0x54] sm:$0xf]
    %v1142 = vld [vmem:[%s4 + $0x58] sm:$0xf]
    %v1143 = vld [vmem:[%s4 + $0x5c] sm:$0xf]
    %v1144 = vld [vmem:[%s4 + $0x60] sm:$0xf]
    %v1145 = vld [vmem:[%s4 + $0x64] sm:$0xf]
    %v1146 = vld [vmem:[%s4 + $0x68] sm:$0xf]
    %v1147 = vld [vmem:[%s4 + $0x6c] sm:$0xf]
    %v1148 = vld [vmem:[%s4 + $0x70] sm:$0xf]
    %v1149 = vld [vmem:[%s4 + $0x74] sm:$0xf]
    %v1150 = vld [vmem:[%s4 + $0x78] sm:$0xf]
    %v1151 = vld [vmem:[%s4 + $0x7c] sm:$0xf]
    %v1152 = vld [vmem:[%s5] sm:$0x1]
    %v1154 = vlaneseq
    %v1155 = vshrl.u32 %v1154, 7
    %v1156 = vsub.s32 0, %v1155
    %v1157 = vrot.slane %v1152, %v1156
    %v1191 = vunpack.c.l.b16 %v1120
    %v1192 = vunpack.c.l.b16 %v1121
    %v1193 = vunpack.c.l.b16 %v1122
    %v1194 = vunpack.c.l.b16 %v1123
    %v1195 = vunpack.c.l.b16 %v1124
    %v1196 = vunpack.c.l.b16 %v1125
    %v1197 = vunpack.c.l.b16 %v1126
    %v1198 = vunpack.c.l.b16 %v1127
    %v1199 = vunpack.c.l.b16 %v1128
    %v1200 = vunpack.c.l.b16 %v1129
    %v1201 = vunpack.c.l.b16 %v1130
    %v1202 = vunpack.c.l.b16 %v1131
    %v1203 = vunpack.c.l.b16 %v1132
    %v1204 = vunpack.c.l.b16 %v1133
    %v1205 = vunpack.c.l.b16 %v1134
    %v1206 = vunpack.c.l.b16 %v1135
    %v1207 = vunpack.c.l.b16 %v1136
    %v1208 = vunpack.c.l.b16 %v1137
    %v1209 = vunpack.c.l.b16 %v1138
    %v1210 = vunpack.c.l.b16 %v1139
    %v1211 = vunpack.c.l.b16 %v1140
    %v1212 = vunpack.c.l.b16 %v1141
    %v1213 = vunpack.c.l.b16 %v1142
    %v1214 = vunpack.c.l.b16 %v1143
    %v1215 = vunpack.c.l.b16 %v1144
    %v1216 = vunpack.c.l.b16 %v1145
    %v1217 = vunpack.c.l.b16 %v1146
    %v1218 = vunpack.c.l.b16 %v1147
    %v1219 = vunpack.c.l.b16 %v1148
    %v1220 = vunpack.c.l.b16 %v1149
    %v1221 = vunpack.c.l.b16 %v1150
    %v1222 = vunpack.c.l.b16 %v1151
    %v1223 = vpack.c.b16 %v1192, %v1191
    %v1224 = vpack.c.b16 %v1194, %v1193
    %v1225 = vpack.c.b16 %v1196, %v1195
    %v1226 = vpack.c.b16 %v1198, %v1197
    %v1227 = vpack.c.b16 %v1200, %v1199
    %v1228 = vpack.c.b16 %v1202, %v1201
    %v1229 = vpack.c.b16 %v1204, %v1203
    %v1230 = vpack.c.b16 %v1206, %v1205
    %v1231 = vpack.c.b16 %v1208, %v1207
    %v1232 = vpack.c.b16 %v1210, %v1209
    %v1233 = vpack.c.b16 %v1212, %v1211
    %v1234 = vpack.c.b16 %v1214, %v1213
    %v1235 = vpack.c.b16 %v1216, %v1215
    %v1236 = vpack.c.b16 %v1218, %v1217
    %v1237 = vpack.c.b16 %v1220, %v1219
    %v1238 = vpack.c.b16 %v1222, %v1221
    %1255 = vmatprep.subr.bf16.mxu0 0
    %1256 = vmatpush1.bf16.msra.mxu0 %v1223
    %1257 = vmatprep.subr.bf16.mxu0 0
    %1258 = vmatpush1.bf16.msra.mxu0 %v1224
    %1259 = vmatprep.subr.bf16.mxu0 0
    %1260 = vmatpush1.bf16.msra.mxu0 %v1225
    %1261 = vmatprep.subr.bf16.mxu0 0
    %1262 = vmatpush1.bf16.msra.mxu0 %v1226
    %1263 = vmatprep.subr.bf16.mxu0 0
    %1264 = vmatpush1.bf16.msra.mxu0 %v1227
    %1265 = vmatprep.subr.bf16.mxu0 0
    %1266 = vmatpush1.bf16.msra.mxu0 %v1228
    %1267 = vmatprep.subr.bf16.mxu0 0
    %1268 = vmatpush1.bf16.msra.mxu0 %v1229
    %1269 = vmatprep.subr.bf16.mxu0 0
    %1270 = vmatpush1.bf16.msra.mxu0 %v1230
    %1271 = vmatprep.subr.bf16.mxu0 0
    %1272 = vmatpush1.bf16.msra.mxu0 %v1231
    %1273 = vmatprep.subr.bf16.mxu0 0
    %1274 = vmatpush1.bf16.msra.mxu0 %v1232
    %1275 = vmatprep.subr.bf16.mxu0 0
    %1276 = vmatpush1.bf16.msra.mxu0 %v1233
    %1277 = vmatprep.subr.bf16.mxu0 0
    %1278 = vmatpush1.bf16.msra.mxu0 %v1234
    %1279 = vmatprep.subr.bf16.mxu0 0
    %1280 = vmatpush1.bf16.msra.mxu0 %v1235
    %1281 = vmatprep.subr.bf16.mxu0 0
    %1282 = vmatpush1.bf16.msra.mxu0 %v1236
    %1283 = vmatprep.subr.bf16.mxu0 0
    %1284 = vmatpush1.bf16.msra.mxu0 %v1237
    %1285 = vmatprep.subr.bf16.mxu0 0
    %1286 = vmatpush1.bf16.msra.mxu0 %v1238
    %1287 = vmatprep.mubr.bf16.mxu0 %v1119
    %1288 = vmatmul.mubr.bf16.gmra.mrb[0].mxu0 %v1118
    %v1289 = vpop.f32.mrb[0].mxu0
    %v1290 = vadd.f32 %v1157, %v1289
    %v1291 = vpop.f32.mrb[0].mxu0
    %v1292 = vpop.f32.mrb[0].mxu0
    %v1293 = vpop.f32.mrb[0].mxu0
    %1294 = vdwg.mxu0
    %v1295 = vmax.f32 %v1290, 0.0
    %v1296 = vpack.c.bf16 %v1295, %v1295
    %v1297 = vld [vmem:[#allocation4] sm:$0xff]
    %v1298 = vld [vmem:[#allocation4 + $0x8] sm:$0xff]
    %v1299 = vld [vmem:[#allocation4 + $0x10] sm:$0xff]
    %v1300 = vld [vmem:[#allocation4 + $0x18] sm:$0xff]
    %v1301 = vld [vmem:[#allocation4 + $0x20] sm:$0xff]
    %v1302 = vld [vmem:[#allocation4 + $0x28] sm:$0xff]
    %v1303 = vld [vmem:[#allocation4 + $0x30] sm:$0xff]
    %v1304 = vld [vmem:[#allocation4 + $0x38] sm:$0xff]
    %v1305 = vld [vmem:[#allocation4 + $0x40] sm:$0xff]
    %v1306 = vld [vmem:[#allocation4 + $0x48] sm:$0xff]
    %v1307 = vld [vmem:[#allocation4 + $0x50] sm:$0xff]
    %v1308 = vld [vmem:[#allocation4 + $0x58] sm:$0xff]
    %v1309 = vld [vmem:[#allocation4 + $0x60] sm:$0xff]
    %v1310 = vld [vmem:[#allocation4 + $0x68] sm:$0xff]
    %v1311 = vld [vmem:[#allocation4 + $0x70] sm:$0xff]
    %v1312 = vld [vmem:[#allocation4 + $0x78] sm:$0xff]
    %v1313 = vld [vmem:[%s7] sm:$0x3]
    %v1315 = vlaneseq
    %v1316 = vshrl.u32 %v1315, 7
    %v1317 = vsub.s32 0, %v1316
    %v1318 = vrot.slane %v1313, %v1317
    %v1319 = vlaneseq
    %v1320 = vshrl.u32 %v1319, 7
    %v1321 = vsub.s32 1, %v1320
    %v1322 = vrot.slane %v1313, %v1321
    %v1341 = vunpack.c.l.b16 %v1297
    %v1342 = vunpack.c.h.b16 %v1297
    %v1343 = vunpack.c.l.b16 %v1298
    %v1344 = vunpack.c.h.b16 %v1298
    %v1345 = vunpack.c.l.b16 %v1299
    %v1346 = vunpack.c.h.b16 %v1299
    %v1347 = vunpack.c.l.b16 %v1300
    %v1348 = vunpack.c.h.b16 %v1300
    %v1349 = vunpack.c.l.b16 %v1301
    %v1350 = vunpack.c.h.b16 %v1301
    %v1351 = vunpack.c.l.b16 %v1302
    %v1352 = vunpack.c.h.b16 %v1302
    %v1353 = vunpack.c.l.b16 %v1303
    %v1354 = vunpack.c.h.b16 %v1303
    %v1355 = vunpack.c.l.b16 %v1304
    %v1356 = vunpack.c.h.b16 %v1304
    %v1357 = vunpack.c.l.b16 %v1305
    %v1358 = vunpack.c.h.b16 %v1305
    %v1359 = vunpack.c.l.b16 %v1306
    %v1360 = vunpack.c.h.b16 %v1306
    %v1361 = vunpack.c.l.b16 %v1307
    %v1362 = vunpack.c.h.b16 %v1307
    %v1363 = vunpack.c.l.b16 %v1308
    %v1364 = vunpack.c.h.b16 %v1308
    %v1365 = vunpack.c.l.b16 %v1309
    %v1366 = vunpack.c.h.b16 %v1309
    %v1367 = vunpack.c.l.b16 %v1310
    %v1368 = vunpack.c.h.b16 %v1310
    %v1369 = vunpack.c.l.b16 %v1311
    %v1370 = vunpack.c.h.b16 %v1311
    %v1371 = vunpack.c.l.b16 %v1312
    %v1372 = vunpack.c.h.b16 %v1312
    %v1373 = vpack.c.b16 %v1343, %v1341
    %v1374 = vpack.c.b16 %v1344, %v1342
    %v1375 = vpack.c.b16 %v1347, %v1345
    %v1376 = vpack.c.b16 %v1348, %v1346
    %v1377 = vpack.c.b16 %v1351, %v1349
    %v1378 = vpack.c.b16 %v1352, %v1350
    %v1379 = vpack.c.b16 %v1355, %v1353
    %v1380 = vpack.c.b16 %v1356, %v1354
    %v1381 = vpack.c.b16 %v1359, %v1357
    %v1382 = vpack.c.b16 %v1360, %v1358
    %v1383 = vpack.c.b16 %v1363, %v1361
    %v1384 = vpack.c.b16 %v1364, %v1362
    %v1385 = vpack.c.b16 %v1367, %v1365
    %v1386 = vpack.c.b16 %v1368, %v1366
    %v1387 = vpack.c.b16 %v1371, %v1369
    %v1388 = vpack.c.b16 %v1372, %v1370
    %1405 = vmatprep.subr.bf16.mxu0 %v1374
    %1406 = vmatpush1.bf16.msra.mxu0 %v1373
    %1407 = vmatprep.subr.bf16.mxu0 %v1376
    %1408 = vmatpush1.bf16.msra.mxu0 %v1375
    %1409 = vmatprep.subr.bf16.mxu0 %v1378
    %1410 = vmatpush1.bf16.msra.mxu0 %v1377
    %1411 = vmatprep.subr.bf16.mxu0 %v1380
    %1412 = vmatpush1.bf16.msra.mxu0 %v1379
    %1413 = vmatprep.subr.bf16.mxu0 %v1382
    %1414 = vmatpush1.bf16.msra.mxu0 %v1381
    %1415 = vmatprep.subr.bf16.mxu0 %v1384
    %1416 = vmatpush1.bf16.msra.mxu0 %v1383
    %1417 = vmatprep.subr.bf16.mxu0 %v1386
    %1418 = vmatpush1.bf16.msra.mxu0 %v1385
    %1419 = vmatprep.subr.bf16.mxu0 %v1388
    %1420 = vmatpush1.bf16.msra.mxu0 %v1387
    %1421 = vmatprep.subr.bf16.mxu0 0
    %1422 = vmatpush1.bf16.msra.mxu0 0
    %1423 = vmatprep.subr.bf16.mxu0 0
    %1424 = vmatpush1.bf16.msra.mxu0 0
    %1425 = vmatprep.subr.bf16.mxu0 0
    %1426 = vmatpush1.bf16.msra.mxu0 0
    %1427 = vmatprep.subr.bf16.mxu0 0
    %1428 = vmatpush1.bf16.msra.mxu0 0
    %1429 = vmatprep.subr.bf16.mxu0 0
    %1430 = vmatpush1.bf16.msra.mxu0 0
    %1431 = vmatprep.subr.bf16.mxu0 0
    %1432 = vmatpush1.bf16.msra.mxu0 0
    %1433 = vmatprep.subr.bf16.mxu0 0
    %1434 = vmatpush1.bf16.msra.mxu0 0
    %1435 = vmatprep.subr.bf16.mxu0 0
    %1436 = vmatpush1.bf16.msra.mxu0 0
    %1437 = vmatprep.mubr.bf16.mxu0 0
    %1438 = vmatmul.mubr.bf16.gmra.mrb[0].mxu0 %v1296
    %v1439 = vpop.f32.mrb[0].mxu0
    %v1440 = vadd.f32 %v1318, %v1439
    %v1441 = vpop.f32.mrb[0].mxu0
    %v1442 = vadd.f32 %v1322, %v1441
    %v1443 = vpop.f32.mrb[0].mxu0
    %v1444 = vpop.f32.mrb[0].mxu0
    %1445 = vdwg.mxu0
    %v1446 = vld [vmem:[%s1] sm:$0x3]
    %v1447 = vmul.f32 %v1442, 0.5
    %v1448 = vmul.f32 %v1447, 1.442695
    %v1449 = vpow.pop %v1448
    %v1450 = vmul.f32 %v1446, %v1449
    %v1451 = vadd.f32 %v1440, %v1450
    %v1452 = vpack.c.bf16 %v1451, %v1451
    %v1453 = vld [vmem:[#allocation6] sm:$0xff]
    %v1454 = vld [vmem:[#allocation6 + $0x8] sm:$0xff]
    %v1455 = vld [vmem:[#allocation6 + $0x10] sm:$0xff]
    %v1456 = vld [vmem:[#allocation6 + $0x18] sm:$0xff]
    %v1457 = vld [vmem:[#allocation6 + $0x20] sm:$0xff]
    %v1458 = vld [vmem:[#allocation6 + $0x28] sm:$0xff]
    %v1459 = vld [vmem:[#allocation6 + $0x30] sm:$0xff]
    %v1460 = vld [vmem:[#allocation6 + $0x38] sm:$0xff]
    %v1461 = vld [vmem:[#allocation6 + $0x40] sm:$0xff]
    %v1462 = vld [vmem:[#allocation6 + $0x48] sm:$0xff]
    %v1463 = vld [vmem:[#allocation6 + $0x50] sm:$0xff]
    %v1464 = vld [vmem:[#allocation6 + $0x58] sm:$0xff]
    %v1465 = vld [vmem:[#allocation6 + $0x60] sm:$0xff]
    %v1466 = vld [vmem:[#allocation6 + $0x68] sm:$0xff]
    %v1467 = vld [vmem:[#allocation6 + $0x70] sm:$0xff]
    %v1468 = vld [vmem:[#allocation6 + $0x78] sm:$0xff]
    %v1469 = vld [vmem:[%s9] sm:$0x3]
    %v1471 = vlaneseq
    %v1472 = vshrl.u32 %v1471, 7
    %v1473 = vsub.s32 0, %v1472
    %v1474 = vrot.slane %v1469, %v1473
    %v1475 = vlaneseq
    %v1476 = vshrl.u32 %v1475, 7
    %v1477 = vsub.s32 1, %v1476
    %v1478 = vrot.slane %v1469, %v1477
    %v1497 = vunpack.c.l.b16 %v1453
    %v1498 = vunpack.c.h.b16 %v1453
    %v1499 = vunpack.c.l.b16 %v1454
    %v1500 = vunpack.c.h.b16 %v1454
    %v1501 = vunpack.c.l.b16 %v1455
    %v1502 = vunpack.c.h.b16 %v1455
    %v1503 = vunpack.c.l.b16 %v1456
    %v1504 = vunpack.c.h.b16 %v1456
    %v1505 = vunpack.c.l.b16 %v1457
    %v1506 = vunpack.c.h.b16 %v1457
    %v1507 = vunpack.c.l.b16 %v1458
    %v1508 = vunpack.c.h.b16 %v1458
    %v1509 = vunpack.c.l.b16 %v1459
    %v1510 = vunpack.c.h.b16 %v1459
    %v1511 = vunpack.c.l.b16 %v1460
    %v1512 = vunpack.c.h.b16 %v1460
    %v1513 = vunpack.c.l.b16 %v1461
    %v1514 = vunpack.c.h.b16 %v1461
    %v1515 = vunpack.c.l.b16 %v1462
    %v1516 = vunpack.c.h.b16 %v1462
    %v1517 = vunpack.c.l.b16 %v1463
    %v1518 = vunpack.c.h.b16 %v1463
    %v1519 = vunpack.c.l.b16 %v1464
    %v1520 = vunpack.c.h.b16 %v1464
    %v1521 = vunpack.c.l.b16 %v1465
    %v1522 = vunpack.c.h.b16 %v1465
    %v1523 = vunpack.c.l.b16 %v1466
    %v1524 = vunpack.c.h.b16 %v1466
    %v1525 = vunpack.c.l.b16 %v1467
    %v1526 = vunpack.c.h.b16 %v1467
    %v1527 = vunpack.c.l.b16 %v1468
    %v1528 = vunpack.c.h.b16 %v1468
    %v1529 = vpack.c.b16 %v1499, %v1497
    %v1530 = vpack.c.b16 %v1500, %v1498
    %v1531 = vpack.c.b16 %v1503, %v1501
    %v1532 = vpack.c.b16 %v1504, %v1502
    %v1533 = vpack.c.b16 %v1507, %v1505
    %v1534 = vpack.c.b16 %v1508, %v1506
    %v1535 = vpack.c.b16 %v1511, %v1509
    %v1536 = vpack.c.b16 %v1512, %v1510
    %v1537 = vpack.c.b16 %v1515, %v1513
    %v1538 = vpack.c.b16 %v1516, %v1514
    %v1539 = vpack.c.b16 %v1519, %v1517
    %v1540 = vpack.c.b16 %v1520, %v1518
    %v1541 = vpack.c.b16 %v1523, %v1521
    %v1542 = vpack.c.b16 %v1524, %v1522
    %v1543 = vpack.c.b16 %v1527, %v1525
    %v1544 = vpack.c.b16 %v1528, %v1526
    %1561 = vmatprep.subr.bf16.mxu0 %v1530
    %1562 = vmatpush1.bf16.msra.mxu0 %v1529
    %1563 = vmatprep.subr.bf16.mxu0 %v1532
    %1564 = vmatpush1.bf16.msra.mxu0 %v1531
    %1565 = vmatprep.subr.bf16.mxu0 %v1534
    %1566 = vmatpush1.bf16.msra.mxu0 %v1533
    %1567 = vmatprep.subr.bf16.mxu0 %v1536
    %1568 = vmatpush1.bf16.msra.mxu0 %v1535
    %1569 = vmatprep.subr.bf16.mxu0 %v1538
    %1570 = vmatpush1.bf16.msra.mxu0 %v1537
    %1571 = vmatprep.subr.bf16.mxu0 %v1540
    %1572 = vmatpush1.bf16.msra.mxu0 %v1539
    %1573 = vmatprep.subr.bf16.mxu0 %v1542
    %1574 = vmatpush1.bf16.msra.mxu0 %v1541
    %1575 = vmatprep.subr.bf16.mxu0 %v1544
    %1576 = vmatpush1.bf16.msra.mxu0 %v1543
    %1577 = vmatprep.subr.bf16.mxu0 0
    %1578 = vmatpush1.bf16.msra.mxu0 0
    %1579 = vmatprep.subr.bf16.mxu0 0
    %1580 = vmatpush1.bf16.msra.mxu0 0
    %1581 = vmatprep.subr.bf16.mxu0 0
    %1582 = vmatpush1.bf16.msra.mxu0 0
    %1583 = vmatprep.subr.bf16.mxu0 0
    %1584 = vmatpush1.bf16.msra.mxu0 0
    %1585 = vmatprep.subr.bf16.mxu0 0
    %1586 = vmatpush1.bf16.msra.mxu0 0
    %1587 = vmatprep.subr.bf16.mxu0 0
    %1588 = vmatpush1.bf16.msra.mxu0 0
    %1589 = vmatprep.subr.bf16.mxu0 0
    %1590 = vmatpush1.bf16.msra.mxu0 0
    %1591 = vmatprep.subr.bf16.mxu0 0
    %1592 = vmatpush1.bf16.msra.mxu0 0
    %1593 = vmatprep.mubr.bf16.mxu0 0
    %1594 = vmatmul.mubr.bf16.gmra.mrb[0].mxu0 %v1452
    %v1595 = vpop.f32.mrb[0].mxu0
    %v1596 = vadd.f32 %v1474, %v1595
    %v1597 = vpop.f32.mrb[0].mxu0
    %v1598 = vadd.f32 %v1478, %v1597
    %v1599 = vpop.f32.mrb[0].mxu0
    %v1600 = vpop.f32.mrb[0].mxu0
    %1601 = vdwg.mxu0
    %v1602 = vpack.c.bf16 %v1596, %v1596
    %v1603 = vld [vmem:[#allocation7] sm:$0xff]
    %v1604 = vld [vmem:[#allocation7 + $0x8] sm:$0xff]
    %v1605 = vld [vmem:[#allocation7 + $0x10] sm:$0xff]
    %v1606 = vld [vmem:[#allocation7 + $0x18] sm:$0xff]
    %v1607 = vld [vmem:[#allocation7 + $0x20] sm:$0xff]
    %v1608 = vld [vmem:[#allocation7 + $0x28] sm:$0xff]
    %v1609 = vld [vmem:[#allocation7 + $0x30] sm:$0xff]
    %v1610 = vld [vmem:[#allocation7 + $0x38] sm:$0xff]
    %v1611 = vld [vmem:[#allocation7 + $0x40] sm:$0xff]
    %v1612 = vld [vmem:[#allocation7 + $0x48] sm:$0xff]
    %v1613 = vld [vmem:[#allocation7 + $0x50] sm:$0xff]
    %v1614 = vld [vmem:[#allocation7 + $0x58] sm:$0xff]
    %v1615 = vld [vmem:[#allocation7 + $0x60] sm:$0xff]
    %v1616 = vld [vmem:[#allocation7 + $0x68] sm:$0xff]
    %v1617 = vld [vmem:[#allocation7 + $0x70] sm:$0xff]
    %v1618 = vld [vmem:[#allocation7 + $0x78] sm:$0xff]
    %v1619 = vld [vmem:[%s11] sm:$0x3]
    %v1621 = vlaneseq
    %v1622 = vshrl.u32 %v1621, 7
    %v1623 = vsub.s32 0, %v1622
    %v1624 = vrot.slane %v1619, %v1623
    %v1625 = vlaneseq
    %v1626 = vshrl.u32 %v1625, 7
    %v1627 = vsub.s32 1, %v1626
    %v1628 = vrot.slane %v1619, %v1627
    %v1647 = vunpack.c.l.b16 %v1603
    %v1648 = vunpack.c.h.b16 %v1603
    %v1649 = vunpack.c.l.b16 %v1604
    %v1650 = vunpack.c.h.b16 %v1604
    %v1651 = vunpack.c.l.b16 %v1605
    %v1652 = vunpack.c.h.b16 %v1605
    %v1653 = vunpack.c.l.b16 %v1606
    %v1654 = vunpack.c.h.b16 %v1606
    %v1655 = vunpack.c.l.b16 %v1607
    %v1656 = vunpack.c.h.b16 %v1607
    %v1657 = vunpack.c.l.b16 %v1608
    %v1658 = vunpack.c.h.b16 %v1608
    %v1659 = vunpack.c.l.b16 %v1609
    %v1660 = vunpack.c.h.b16 %v1609
    %v1661 = vunpack.c.l.b16 %v1610
    %v1662 = vunpack.c.h.b16 %v1610
    %v1663 = vunpack.c.l.b16 %v1611
    %v1664 = vunpack.c.h.b16 %v1611
    %v1665 = vunpack.c.l.b16 %v1612
    %v1666 = vunpack.c.h.b16 %v1612
    %v1667 = vunpack.c.l.b16 %v1613
    %v1668 = vunpack.c.h.b16 %v1613
    %v1669 = vunpack.c.l.b16 %v1614
    %v1670 = vunpack.c.h.b16 %v1614
    %v1671 = vunpack.c.l.b16 %v1615
    %v1672 = vunpack.c.h.b16 %v1615
    %v1673 = vunpack.c.l.b16 %v1616
    %v1674 = vunpack.c.h.b16 %v1616
    %v1675 = vunpack.c.l.b16 %v1617
    %v1676 = vunpack.c.h.b16 %v1617
    %v1677 = vunpack.c.l.b16 %v1618
    %v1678 = vunpack.c.h.b16 %v1618
    %v1679 = vpack.c.b16 %v1649, %v1647
    %v1680 = vpack.c.b16 %v1650, %v1648
    %v1681 = vpack.c.b16 %v1653, %v1651
    %v1682 = vpack.c.b16 %v1654, %v1652
    %v1683 = vpack.c.b16 %v1657, %v1655
    %v1684 = vpack.c.b16 %v1658, %v1656
    %v1685 = vpack.c.b16 %v1661, %v1659
    %v1686 = vpack.c.b16 %v1662, %v1660
    %v1687 = vpack.c.b16 %v1665, %v1663
    %v1688 = vpack.c.b16 %v1666, %v1664
    %v1689 = vpack.c.b16 %v1669, %v1667
    %v1690 = vpack.c.b16 %v1670, %v1668
    %v1691 = vpack.c.b16 %v1673, %v1671
    %v1692 = vpack.c.b16 %v1674, %v1672
    %v1693 = vpack.c.b16 %v1677, %v1675
    %v1694 = vpack.c.b16 %v1678, %v1676
    %1711 = vmatprep.subr.bf16.mxu0 %v1680
    %1712 = vmatpush1.bf16.msra.mxu0 %v1679
    %1713 = vmatprep.subr.bf16.mxu0 %v1682
    %1714 = vmatpush1.bf16.msra.mxu0 %v1681
    %1715 = vmatprep.subr.bf16.mxu0 %v1684
    %1716 = vmatpush1.bf16.msra.mxu0 %v1683
    %1717 = vmatprep.subr.bf16.mxu0 %v1686
    %1718 = vmatpush1.bf16.msra.mxu0 %v1685
    %1719 = vmatprep.subr.bf16.mxu0 %v1688
    %1720 = vmatpush1.bf16.msra.mxu0 %v1687
    %1721 = vmatprep.subr.bf16.mxu0 %v1690
    %1722 = vmatpush1.bf16.msra.mxu0 %v1689
    %1723 = vmatprep.subr.bf16.mxu0 %v1692
    %1724 = vmatpush1.bf16.msra.mxu0 %v1691
    %1725 = vmatprep.subr.bf16.mxu0 %v1694
    %1726 = vmatpush1.bf16.msra.mxu0 %v1693
    %1727 = vmatprep.subr.bf16.mxu0 0
    %1728 = vmatpush1.bf16.msra.mxu0 0
    %1729 = vmatprep.subr.bf16.mxu0 0
    %1730 = vmatpush1.bf16.msra.mxu0 0
    %1731 = vmatprep.subr.bf16.mxu0 0
    %1732 = vmatpush1.bf16.msra.mxu0 0
    %1733 = vmatprep.subr.bf16.mxu0 0
    %1734 = vmatpush1.bf16.msra.mxu0 0
    %1735 = vmatprep.subr.bf16.mxu0 0
    %1736 = vmatpush1.bf16.msra.mxu0 0
    %1737 = vmatprep.subr.bf16.mxu0 0
    %1738 = vmatpush1.bf16.msra.mxu0 0
    %1739 = vmatprep.subr.bf16.mxu0 0
    %1740 = vmatpush1.bf16.msra.mxu0 0
    %1741 = vmatprep.subr.bf16.mxu0 0
    %1742 = vmatpush1.bf16.msra.mxu0 0
    %1743 = vmatprep.mubr.bf16.mxu0 0
    %1744 = vmatmul.mubr.bf16.gmra.mrb[0].mxu0 %v1602
    %v1745 = vpop.f32.mrb[0].mxu0
    %v1746 = vadd.f32 %v1624, %v1745
    %v1747 = vpop.f32.mrb[0].mxu0
    %v1748 = vadd.f32 %v1628, %v1747
    %v1749 = vpop.f32.mrb[0].mxu0
    %v1750 = vpop.f32.mrb[0].mxu0
    %1751 = vdwg.mxu0
    %v1752 = vmax.f32 %v1746, 0.0
    %v1753 = vmax.f32 %v1748, 0.0
    %v1754 = vpack.c.bf16 %v1752, %v1752
    %v1755 = vpack.c.bf16 %v1753, %v1753
    %v1756 = vld [vmem:[#allocation9] sm:$0xff]
    %v1757 = vld [vmem:[#allocation9 + $0x8] sm:$0xff]
    %v1758 = vld [vmem:[#allocation9 + $0x10] sm:$0xff]
    %v1759 = vld [vmem:[#allocation9 + $0x18] sm:$0xff]
    %v1760 = vld [vmem:[#allocation9 + $0x20] sm:$0xff]
    %v1761 = vld [vmem:[#allocation9 + $0x28] sm:$0xff]
    %v1762 = vld [vmem:[#allocation9 + $0x30] sm:$0xff]
    %v1763 = vld [vmem:[#allocation9 + $0x38] sm:$0xff]
    %v1764 = vld [vmem:[#allocation9 + $0x40] sm:$0xff]
    %v1765 = vld [vmem:[#allocation9 + $0x48] sm:$0xff]
    %v1766 = vld [vmem:[#allocation9 + $0x50] sm:$0xff]
    %v1767 = vld [vmem:[#allocation9 + $0x58] sm:$0xff]
    %v1768 = vld [vmem:[#allocation9 + $0x60] sm:$0xff]
    %v1769 = vld [vmem:[#allocation9 + $0x68] sm:$0xff]
    %v1770 = vld [vmem:[#allocation9 + $0x70] sm:$0xff]
    %v1771 = vld [vmem:[#allocation9 + $0x78] sm:$0xff]
    %v1772 = vld [vmem:[#allocation9 + $0x80] sm:$0xff]
    %v1773 = vld [vmem:[#allocation9 + $0x88] sm:$0xff]
    %v1774 = vld [vmem:[#allocation9 + $0x90] sm:$0xff]
    %v1775 = vld [vmem:[#allocation9 + $0x98] sm:$0xff]
    %v1776 = vld [vmem:[#allocation9 + $0xa0] sm:$0xff]
    %v1777 = vld [vmem:[#allocation9 + $0xa8] sm:$0xff]
    %v1778 = vld [vmem:[#allocation9 + $0xb0] sm:$0xff]
    %v1779 = vld [vmem:[#allocation9 + $0xb8] sm:$0xff]
    %v1780 = vld [vmem:[#allocation9 + $0xc0] sm:$0xff]
    %v1781 = vld [vmem:[#allocation9 + $0xc8] sm:$0xff]
    %v1782 = vld [vmem:[#allocation9 + $0xd0] sm:$0xff]
    %v1783 = vld [vmem:[#allocation9 + $0xd8] sm:$0xff]
    %v1784 = vld [vmem:[#allocation9 + $0xe0] sm:$0xff]
    %v1785 = vld [vmem:[#allocation9 + $0xe8] sm:$0xff]
    %v1786 = vld [vmem:[#allocation9 + $0xf0] sm:$0xff]
    %v1787 = vld [vmem:[#allocation9 + $0xf8] sm:$0xff]
    %v1788 = vld [vmem:[#allocation9 + $0x100] sm:$0xff]
    %v1789 = vld [vmem:[#allocation9 + $0x108] sm:$0xff]
    %v1790 = vld [vmem:[#allocation9 + $0x110] sm:$0xff]
    %v1791 = vld [vmem:[#allocation9 + $0x118] sm:$0xff]
    %v1792 = vld [vmem:[#allocation9 + $0x120] sm:$0xff]
    %v1793 = vld [vmem:[#allocation9 + $0x128] sm:$0xff]
    %v1794 = vld [vmem:[#allocation9 + $0x130] sm:$0xff]
    %v1795 = vld [vmem:[#allocation9 + $0x138] sm:$0xff]
    %v1796 = vld [vmem:[#allocation9 + $0x140] sm:$0xff]
    %v1797 = vld [vmem:[#allocation9 + $0x148] sm:$0xff]
    %v1798 = vld [vmem:[#allocation9 + $0x150] sm:$0xff]
    %v1799 = vld [vmem:[#allocation9 + $0x158] sm:$0xff]
    %v1800 = vld [vmem:[#allocation9 + $0x160] sm:$0xff]
    %v1801 = vld [vmem:[#allocation9 + $0x168] sm:$0xff]
    %v1802 = vld [vmem:[#allocation9 + $0x170] sm:$0xff]
    %v1803 = vld [vmem:[#allocation9 + $0x178] sm:$0xff]
    %v1804 = vld [vmem:[#allocation9 + $0x180] sm:$0xff]
    %v1805 = vld [vmem:[#allocation9 + $0x188] sm:$0xff]
    %v1806 = vld [vmem:[#allocation9 + $0x190] sm:$0xff]
    %v1807 = vld [vmem:[#allocation9 + $0x198] sm:$0xff]
    %v1808 = vld [vmem:[#allocation9 + $0x1a0] sm:$0xff]
    %v1809 = vld [vmem:[#allocation9 + $0x1a8] sm:$0xff]
    %v1810 = vld [vmem:[#allocation9 + $0x1b0] sm:$0xff]
    %v1811 = vld [vmem:[#allocation9 + $0x1b8] sm:$0xff]
    %v1812 = vld [vmem:[#allocation9 + $0x1c0] sm:$0xff]
    %v1813 = vld [vmem:[#allocation9 + $0x1c8] sm:$0xff]
    %v1814 = vld [vmem:[#allocation9 + $0x1d0] sm:$0xff]
    %v1815 = vld [vmem:[#allocation9 + $0x1d8] sm:$0xff]
    %v1816 = vld [vmem:[#allocation9 + $0x1e0] sm:$0xff]
    %v1817 = vld [vmem:[#allocation9 + $0x1e8] sm:$0xff]
    %v1818 = vld [vmem:[#allocation9 + $0x1f0] sm:$0xff]
    %v1819 = vld [vmem:[#allocation9 + $0x1f8] sm:$0xff]
    %v1820 = vld [vmem:[#allocation9 + $0x200] sm:$0xff]
    %v1821 = vld [vmem:[#allocation9 + $0x208] sm:$0xff]
    %v1822 = vld [vmem:[#allocation9 + $0x210] sm:$0xff]
    %v1823 = vld [vmem:[#allocation9 + $0x218] sm:$0xff]
    %v1824 = vld [vmem:[#allocation9 + $0x220] sm:$0xff]
    %v1825 = vld [vmem:[#allocation9 + $0x228] sm:$0xff]
    %v1826 = vld [vmem:[#allocation9 + $0x230] sm:$0xff]
    %v1827 = vld [vmem:[#allocation9 + $0x238] sm:$0xff]
    %v1828 = vld [vmem:[#allocation9 + $0x240] sm:$0xff]
    %v1829 = vld [vmem:[#allocation9 + $0x248] sm:$0xff]
    %v1830 = vld [vmem:[#allocation9 + $0x250] sm:$0xff]
    %v1831 = vld [vmem:[#allocation9 + $0x258] sm:$0xff]
    %v1832 = vld [vmem:[#allocation9 + $0x260] sm:$0xff]
    %v1833 = vld [vmem:[#allocation9 + $0x268] sm:$0xff]
    %v1834 = vld [vmem:[#allocation9 + $0x270] sm:$0xff]
    %v1835 = vld [vmem:[#allocation9 + $0x278] sm:$0xff]
    %v1836 = vld [vmem:[#allocation9 + $0x280] sm:$0xff]
    %v1837 = vld [vmem:[#allocation9 + $0x288] sm:$0xff]
    %v1838 = vld [vmem:[#allocation9 + $0x290] sm:$0xff]
    %v1839 = vld [vmem:[#allocation9 + $0x298] sm:$0xff]
    %v1840 = vld [vmem:[#allocation9 + $0x2a0] sm:$0xff]
    %v1841 = vld [vmem:[#allocation9 + $0x2a8] sm:$0xff]
    %v1842 = vld [vmem:[#allocation9 + $0x2b0] sm:$0xff]
    %v1843 = vld [vmem:[#allocation9 + $0x2b8] sm:$0xff]
    %v1844 = vld [vmem:[#allocation9 + $0x2c0] sm:$0xff]
    %v1845 = vld [vmem:[#allocation9 + $0x2c8] sm:$0xff]
    %v1846 = vld [vmem:[#allocation9 + $0x2d0] sm:$0xff]
    %v1847 = vld [vmem:[#allocation9 + $0x2d8] sm:$0xff]
    %v1848 = vld [vmem:[#allocation9 + $0x2e0] sm:$0xff]
    %v1849 = vld [vmem:[#allocation9 + $0x2e8] sm:$0xff]
    %v1850 = vld [vmem:[#allocation9 + $0x2f0] sm:$0xff]
    %v1851 = vld [vmem:[#allocation9 + $0x2f8] sm:$0xff]
    %v1852 = vld [vmem:[#allocation9 + $0x300] sm:$0xff]
    %v1853 = vld [vmem:[#allocation9 + $0x308] sm:$0xff]
    %v1854 = vld [vmem:[#allocation9 + $0x310] sm:$0xff]
    %v1855 = vld [vmem:[#allocation9 + $0x318] sm:$0xff]
    %v1856 = vld [vmem:[#allocation9 + $0x320] sm:$0xff]
    %v1857 = vld [vmem:[#allocation9 + $0x328] sm:$0xff]
    %v1858 = vld [vmem:[#allocation9 + $0x330] sm:$0xff]
    %v1859 = vld [vmem:[#allocation9 + $0x338] sm:$0xff]
    %v1860 = vld [vmem:[#allocation9 + $0x340] sm:$0xff]
    %v1861 = vld [vmem:[#allocation9 + $0x348] sm:$0xff]
    %v1862 = vld [vmem:[#allocation9 + $0x350] sm:$0xff]
    %v1863 = vld [vmem:[#allocation9 + $0x358] sm:$0xff]
    %v1864 = vld [vmem:[#allocation9 + $0x360] sm:$0xff]
    %v1865 = vld [vmem:[#allocation9 + $0x368] sm:$0xff]
    %v1866 = vld [vmem:[#allocation9 + $0x370] sm:$0xff]
    %v1867 = vld [vmem:[#allocation9 + $0x378] sm:$0xff]
    %v1868 = vld [vmem:[#allocation9 + $0x380] sm:$0xff]
    %v1869 = vld [vmem:[#allocation9 + $0x388] sm:$0xff]
    %v1870 = vld [vmem:[#allocation9 + $0x390] sm:$0xff]
    %v1871 = vld [vmem:[#allocation9 + $0x398] sm:$0xff]
    %v1872 = vld [vmem:[#allocation9 + $0x3a0] sm:$0xff]
    %v1873 = vld [vmem:[#allocation9 + $0x3a8] sm:$0xff]
    %v1874 = vld [vmem:[#allocation9 + $0x3b0] sm:$0xff]
    %v1875 = vld [vmem:[#allocation9 + $0x3b8] sm:$0xff]
    %v1876 = vld [vmem:[#allocation9 + $0x3c0] sm:$0xff]
    %v1877 = vld [vmem:[#allocation9 + $0x3c8] sm:$0xff]
    %v1878 = vld [vmem:[#allocation9 + $0x3d0] sm:$0xff]
    %v1879 = vld [vmem:[#allocation9 + $0x3d8] sm:$0xff]
    %v1880 = vld [vmem:[#allocation9 + $0x3e0] sm:$0xff]
    %v1881 = vld [vmem:[#allocation9 + $0x3e8] sm:$0xff]
    %v1882 = vld [vmem:[#allocation9 + $0x3f0] sm:$0xff]
    %v1883 = vld [vmem:[#allocation9 + $0x3f8] sm:$0xff]
    %v1884 = vld [vmem:[%s13] sm:$0xff]
    %v1886 = vlaneseq
    %v1887 = vshrl.u32 %v1886, 7
    %v1888 = vsub.s32 0, %v1887
    %v1889 = vrot.slane %v1884, %v1888
    %v1890 = vlaneseq
    %v1891 = vshrl.u32 %v1890, 7
    %v1892 = vsub.s32 1, %v1891
    %v1893 = vrot.slane %v1884, %v1892
    %v1894 = vlaneseq
    %v1895 = vshrl.u32 %v1894, 7
    %v1896 = vsub.s32 2, %v1895
    %v1897 = vrot.slane %v1884, %v1896
    %v1898 = vlaneseq
    %v1899 = vshrl.u32 %v1898, 7
    %v1900 = vsub.s32 3, %v1899
    %v1901 = vrot.slane %v1884, %v1900
    %v1902 = vlaneseq
    %v1903 = vshrl.u32 %v1902, 7
    %v1904 = vsub.s32 4, %v1903
    %v1905 = vrot.slane %v1884, %v1904
    %v1906 = vlaneseq
    %v1907 = vshrl.u32 %v1906, 7
    %v1908 = vsub.s32 5, %v1907
    %v1909 = vrot.slane %v1884, %v1908
    %v1910 = vlaneseq
    %v1911 = vshrl.u32 %v1910, 7
    %v1912 = vsub.s32 6, %v1911
    %v1913 = vrot.slane %v1884, %v1912
    %v1914 = vlaneseq
    %v1915 = vshrl.u32 %v1914, 7
    %v1916 = vsub.s32 7, %v1915
    %v1917 = vrot.slane %v1884, %v1916
    %v2054 = vunpack.c.l.b16 %v1756
    %v2055 = vunpack.c.h.b16 %v1756
    %v2056 = vunpack.c.l.b16 %v1757
    %v2057 = vunpack.c.h.b16 %v1757
    %v2058 = vunpack.c.l.b16 %v1758
    %v2059 = vunpack.c.h.b16 %v1758
    %v2060 = vunpack.c.l.b16 %v1759
    %v2061 = vunpack.c.h.b16 %v1759
    %v2062 = vunpack.c.l.b16 %v1760
    %v2063 = vunpack.c.h.b16 %v1760
    %v2064 = vunpack.c.l.b16 %v1761
    %v2065 = vunpack.c.h.b16 %v1761
    %v2066 = vunpack.c.l.b16 %v1762
    %v2067 = vunpack.c.h.b16 %v1762
    %v2068 = vunpack.c.l.b16 %v1763
    %v2069 = vunpack.c.h.b16 %v1763
    %v2070 = vunpack.c.l.b16 %v1764
    %v2071 = vunpack.c.h.b16 %v1764
    %v2072 = vunpack.c.l.b16 %v1765
    %v2073 = vunpack.c.h.b16 %v1765
    %v2074 = vunpack.c.l.b16 %v1766
    %v2075 = vunpack.c.h.b16 %v1766
    %v2076 = vunpack.c.l.b16 %v1767
    %v2077 = vunpack.c.h.b16 %v1767
    %v2078 = vunpack.c.l.b16 %v1768
    %v2079 = vunpack.c.h.b16 %v1768
    %v2080 = vunpack.c.l.b16 %v1769
    %v2081 = vunpack.c.h.b16 %v1769
    %v2082 = vunpack.c.l.b16 %v1770
    %v2083 = vunpack.c.h.b16 %v1770
    %v2084 = vunpack.c.l.b16 %v1771
    %v2085 = vunpack.c.h.b16 %v1771
    %v2086 = vunpack.c.l.b16 %v1772
    %v2087 = vunpack.c.h.b16 %v1772
    %v2088 = vunpack.c.l.b16 %v1773
    %v2089 = vunpack.c.h.b16 %v1773
    %v2090 = vunpack.c.l.b16 %v1774
    %v2091 = vunpack.c.h.b16 %v1774
    %v2092 = vunpack.c.l.b16 %v1775
    %v2093 = vunpack.c.h.b16 %v1775
    %v2094 = vunpack.c.l.b16 %v1776
    %v2095 = vunpack.c.h.b16 %v1776
    %v2096 = vunpack.c.l.b16 %v1777
    %v2097 = vunpack.c.h.b16 %v1777
    %v2098 = vunpack.c.l.b16 %v1778
    %v2099 = vunpack.c.h.b16 %v1778
    %v2100 = vunpack.c.l.b16 %v1779
    %v2101 = vunpack.c.h.b16 %v1779
    %v2102 = vunpack.c.l.b16 %v1780
    %v2103 = vunpack.c.h.b16 %v1780
    %v2104 = vunpack.c.l.b16 %v1781
    %v2105 = vunpack.c.h.b16 %v1781
    %v2106 = vunpack.c.l.b16 %v1782
    %v2107 = vunpack.c.h.b16 %v1782
    %v2108 = vunpack.c.l.b16 %v1783
    %v2109 = vunpack.c.h.b16 %v1783
    %v2110 = vunpack.c.l.b16 %v1784
    %v2111 = vunpack.c.h.b16 %v1784
    %v2112 = vunpack.c.l.b16 %v1785
    %v2113 = vunpack.c.h.b16 %v1785
    %v2114 = vunpack.c.l.b16 %v1786
    %v2115 = vunpack.c.h.b16 %v1786
    %v2116 = vunpack.c.l.b16 %v1787
    %v2117 = vunpack.c.h.b16 %v1787
    %v2118 = vunpack.c.l.b16 %v1788
    %v2119 = vunpack.c.h.b16 %v1788
    %v2120 = vunpack.c.l.b16 %v1789
    %v2121 = vunpack.c.h.b16 %v1789
    %v2122 = vunpack.c.l.b16 %v1790
    %v2123 = vunpack.c.h.b16 %v1790
    %v2124 = vunpack.c.l.b16 %v1791
    %v2125 = vunpack.c.h.b16 %v1791
    %v2126 = vunpack.c.l.b16 %v1792
    %v2127 = vunpack.c.h.b16 %v1792
    %v2128 = vunpack.c.l.b16 %v1793
    %v2129 = vunpack.c.h.b16 %v1793
    %v2130 = vunpack.c.l.b16 %v1794
    %v2131 = vunpack.c.h.b16 %v1794
    %v2132 = vunpack.c.l.b16 %v1795
    %v2133 = vunpack.c.h.b16 %v1795
    %v2134 = vunpack.c.l.b16 %v1796
    %v2135 = vunpack.c.h.b16 %v1796
    %v2136 = vunpack.c.l.b16 %v1797
    %v2137 = vunpack.c.h.b16 %v1797
    %v2138 = vunpack.c.l.b16 %v1798
    %v2139 = vunpack.c.h.b16 %v1798
    %v2140 = vunpack.c.l.b16 %v1799
    %v2141 = vunpack.c.h.b16 %v1799
    %v2142 = vunpack.c.l.b16 %v1800
    %v2143 = vunpack.c.h.b16 %v1800
    %v2144 = vunpack.c.l.b16 %v1801
    %v2145 = vunpack.c.h.b16 %v1801
    %v2146 = vunpack.c.l.b16 %v1802
    %v2147 = vunpack.c.h.b16 %v1802
    %v2148 = vunpack.c.l.b16 %v1803
    %v2149 = vunpack.c.h.b16 %v1803
    %v2150 = vunpack.c.l.b16 %v1804
    %v2151 = vunpack.c.h.b16 %v1804
    %v2152 = vunpack.c.l.b16 %v1805
    %v2153 = vunpack.c.h.b16 %v1805
    %v2154 = vunpack.c.l.b16 %v1806
    %v2155 = vunpack.c.h.b16 %v1806
    %v2156 = vunpack.c.l.b16 %v1807
    %v2157 = vunpack.c.h.b16 %v1807
    %v2158 = vunpack.c.l.b16 %v1808
    %v2159 = vunpack.c.h.b16 %v1808
    %v2160 = vunpack.c.l.b16 %v1809
    %v2161 = vunpack.c.h.b16 %v1809
    %v2162 = vunpack.c.l.b16 %v1810
    %v2163 = vunpack.c.h.b16 %v1810
    %v2164 = vunpack.c.l.b16 %v1811
    %v2165 = vunpack.c.h.b16 %v1811
    %v2166 = vunpack.c.l.b16 %v1812
    %v2167 = vunpack.c.h.b16 %v1812
    %v2168 = vunpack.c.l.b16 %v1813
    %v2169 = vunpack.c.h.b16 %v1813
    %v2170 = vunpack.c.l.b16 %v1814
    %v2171 = vunpack.c.h.b16 %v1814
    %v2172 = vunpack.c.l.b16 %v1815
    %v2173 = vunpack.c.h.b16 %v1815
    %v2174 = vunpack.c.l.b16 %v1816
    %v2175 = vunpack.c.h.b16 %v1816
    %v2176 = vunpack.c.l.b16 %v1817
    %v2177 = vunpack.c.h.b16 %v1817
    %v2178 = vunpack.c.l.b16 %v1818
    %v2179 = vunpack.c.h.b16 %v1818
    %v2180 = vunpack.c.l.b16 %v1819
    %v2181 = vunpack.c.h.b16 %v1819
    %v2182 = vunpack.c.l.b16 %v1820
    %v2183 = vunpack.c.h.b16 %v1820
    %v2184 = vunpack.c.l.b16 %v1821
    %v2185 = vunpack.c.h.b16 %v1821
    %v2186 = vunpack.c.l.b16 %v1822
    %v2187 = vunpack.c.h.b16 %v1822
    %v2188 = vunpack.c.l.b16 %v1823
    %v2189 = vunpack.c.h.b16 %v1823
    %v2190 = vunpack.c.l.b16 %v1824
    %v2191 = vunpack.c.h.b16 %v1824
    %v2192 = vunpack.c.l.b16 %v1825
    %v2193 = vunpack.c.h.b16 %v1825
    %v2194 = vunpack.c.l.b16 %v1826
    %v2195 = vunpack.c.h.b16 %v1826
    %v2196 = vunpack.c.l.b16 %v1827
    %v2197 = vunpack.c.h.b16 %v1827
    %v2198 = vunpack.c.l.b16 %v1828
    %v2199 = vunpack.c.h.b16 %v1828
    %v2200 = vunpack.c.l.b16 %v1829
    %v2201 = vunpack.c.h.b16 %v1829
    %v2202 = vunpack.c.l.b16 %v1830
    %v2203 = vunpack.c.h.b16 %v1830
    %v2204 = vunpack.c.l.b16 %v1831
    %v2205 = vunpack.c.h.b16 %v1831
    %v2206 = vunpack.c.l.b16 %v1832
    %v2207 = vunpack.c.h.b16 %v1832
    %v2208 = vunpack.c.l.b16 %v1833
    %v2209 = vunpack.c.h.b16 %v1833
    %v2210 = vunpack.c.l.b16 %v1834
    %v2211 = vunpack.c.h.b16 %v1834
    %v2212 = vunpack.c.l.b16 %v1835
    %v2213 = vunpack.c.h.b16 %v1835
    %v2214 = vunpack.c.l.b16 %v1836
    %v2215 = vunpack.c.h.b16 %v1836
    %v2216 = vunpack.c.l.b16 %v1837
    %v2217 = vunpack.c.h.b16 %v1837
    %v2218 = vunpack.c.l.b16 %v1838
    %v2219 = vunpack.c.h.b16 %v1838
    %v2220 = vunpack.c.l.b16 %v1839
    %v2221 = vunpack.c.h.b16 %v1839
    %v2222 = vunpack.c.l.b16 %v1840
    %v2223 = vunpack.c.h.b16 %v1840
    %v2224 = vunpack.c.l.b16 %v1841
    %v2225 = vunpack.c.h.b16 %v1841
    %v2226 = vunpack.c.l.b16 %v1842
    %v2227 = vunpack.c.h.b16 %v1842
    %v2228 = vunpack.c.l.b16 %v1843
    %v2229 = vunpack.c.h.b16 %v1843
    %v2230 = vunpack.c.l.b16 %v1844
    %v2231 = vunpack.c.h.b16 %v1844
    %v2232 = vunpack.c.l.b16 %v1845
    %v2233 = vunpack.c.h.b16 %v1845
    %v2234 = vunpack.c.l.b16 %v1846
    %v2235 = vunpack.c.h.b16 %v1846
    %v2236 = vunpack.c.l.b16 %v1847
    %v2237 = vunpack.c.h.b16 %v1847
    %v2238 = vunpack.c.l.b16 %v1848
    %v2239 = vunpack.c.h.b16 %v1848
    %v2240 = vunpack.c.l.b16 %v1849
    %v2241 = vunpack.c.h.b16 %v1849
    %v2242 = vunpack.c.l.b16 %v1850
    %v2243 = vunpack.c.h.b16 %v1850
    %v2244 = vunpack.c.l.b16 %v1851
    %v2245 = vunpack.c.h.b16 %v1851
    %v2246 = vunpack.c.l.b16 %v1852
    %v2247 = vunpack.c.h.b16 %v1852
    %v2248 = vunpack.c.l.b16 %v1853
    %v2249 = vunpack.c.h.b16 %v1853
    %v2250 = vunpack.c.l.b16 %v1854
    %v2251 = vunpack.c.h.b16 %v1854
    %v2252 = vunpack.c.l.b16 %v1855
    %v2253 = vunpack.c.h.b16 %v1855
    %v2254 = vunpack.c.l.b16 %v1856
    %v2255 = vunpack.c.h.b16 %v1856
    %v2256 = vunpack.c.l.b16 %v1857
    %v2257 = vunpack.c.h.b16 %v1857
    %v2258 = vunpack.c.l.b16 %v1858
    %v2259 = vunpack.c.h.b16 %v1858
    %v2260 = vunpack.c.l.b16 %v1859
    %v2261 = vunpack.c.h.b16 %v1859
    %v2262 = vunpack.c.l.b16 %v1860
    %v2263 = vunpack.c.h.b16 %v1860
    %v2264 = vunpack.c.l.b16 %v1861
    %v2265 = vunpack.c.h.b16 %v1861
    %v2266 = vunpack.c.l.b16 %v1862
    %v2267 = vunpack.c.h.b16 %v1862
    %v2268 = vunpack.c.l.b16 %v1863
    %v2269 = vunpack.c.h.b16 %v1863
    %v2270 = vunpack.c.l.b16 %v1864
    %v2271 = vunpack.c.h.b16 %v1864
    %v2272 = vunpack.c.l.b16 %v1865
    %v2273 = vunpack.c.h.b16 %v1865
    %v2274 = vunpack.c.l.b16 %v1866
    %v2275 = vunpack.c.h.b16 %v1866
    %v2276 = vunpack.c.l.b16 %v1867
    %v2277 = vunpack.c.h.b16 %v1867
    %v2278 = vunpack.c.l.b16 %v1868
    %v2279 = vunpack.c.h.b16 %v1868
    %v2280 = vunpack.c.l.b16 %v1869
    %v2281 = vunpack.c.h.b16 %v1869
    %v2282 = vunpack.c.l.b16 %v1870
    %v2283 = vunpack.c.h.b16 %v1870
    %v2284 = vunpack.c.l.b16 %v1871
    %v2285 = vunpack.c.h.b16 %v1871
    %v2286 = vunpack.c.l.b16 %v1872
    %v2287 = vunpack.c.h.b16 %v1872
    %v2288 = vunpack.c.l.b16 %v1873
    %v2289 = vunpack.c.h.b16 %v1873
    %v2290 = vunpack.c.l.b16 %v1874
    %v2291 = vunpack.c.h.b16 %v1874
    %v2292 = vunpack.c.l.b16 %v1875
    %v2293 = vunpack.c.h.b16 %v1875
    %v2294 = vunpack.c.l.b16 %v1876
    %v2295 = vunpack.c.h.b16 %v1876
    %v2296 = vunpack.c.l.b16 %v1877
    %v2297 = vunpack.c.h.b16 %v1877
    %v2298 = vunpack.c.l.b16 %v1878
    %v2299 = vunpack.c.h.b16 %v1878
    %v2300 = vunpack.c.l.b16 %v1879
    %v2301 = vunpack.c.h.b16 %v1879
    %v2302 = vunpack.c.l.b16 %v1880
    %v2303 = vunpack.c.h.b16 %v1880
    %v2304 = vunpack.c.l.b16 %v1881
    %v2305 = vunpack.c.h.b16 %v1881
    %v2306 = vunpack.c.l.b16 %v1882
    %v2307 = vunpack.c.h.b16 %v1882
    %v2308 = vunpack.c.l.b16 %v1883
    %v2309 = vunpack.c.h.b16 %v1883
    %v2310 = vpack.c.b16 %v2062, %v2054
    %v2311 = vpack.c.b16 %v2063, %v2055
    %v2312 = vpack.c.b16 %v2064, %v2056
    %v2313 = vpack.c.b16 %v2065, %v2057
    %v2314 = vpack.c.b16 %v2066, %v2058
    %v2315 = vpack.c.b16 %v2067, %v2059
    %v2316 = vpack.c.b16 %v2068, %v2060
    %v2317 = vpack.c.b16 %v2069, %v2061
    %v2318 = vpack.c.b16 %v2078, %v2070
    %v2319 = vpack.c.b16 %v2079, %v2071
    %v2320 = vpack.c.b16 %v2080, %v2072
    %v2321 = vpack.c.b16 %v2081, %v2073
    %v2322 = vpack.c.b16 %v2082, %v2074
    %v2323 = vpack.c.b16 %v2083, %v2075
    %v2324 = vpack.c.b16 %v2084, %v2076
    %v2325 = vpack.c.b16 %v2085, %v2077
    %v2326 = vpack.c.b16 %v2094, %v2086
    %v2327 = vpack.c.b16 %v2095, %v2087
    %v2328 = vpack.c.b16 %v2096, %v2088
    %v2329 = vpack.c.b16 %v2097, %v2089
    %v2330 = vpack.c.b16 %v2098, %v2090
    %v2331 = vpack.c.b16 %v2099, %v2091
    %v2332 = vpack.c.b16 %v2100, %v2092
    %v2333 = vpack.c.b16 %v2101, %v2093
    %v2334 = vpack.c.b16 %v2110, %v2102
    %v2335 = vpack.c.b16 %v2111, %v2103
    %v2336 = vpack.c.b16 %v2112, %v2104
    %v2337 = vpack.c.b16 %v2113, %v2105
    %v2338 = vpack.c.b16 %v2114, %v2106
    %v2339 = vpack.c.b16 %v2115, %v2107
    %v2340 = vpack.c.b16 %v2116, %v2108
    %v2341 = vpack.c.b16 %v2117, %v2109
    %v2342 = vpack.c.b16 %v2126, %v2118
    %v2343 = vpack.c.b16 %v2127, %v2119
    %v2344 = vpack.c.b16 %v2128, %v2120
    %v2345 = vpack.c.b16 %v2129, %v2121
    %v2346 = vpack.c.b16 %v2130, %v2122
    %v2347 = vpack.c.b16 %v2131, %v2123
    %v2348 = vpack.c.b16 %v2132, %v2124
    %v2349 = vpack.c.b16 %v2133, %v2125
    %v2350 = vpack.c.b16 %v2142, %v2134
    %v2351 = vpack.c.b16 %v2143, %v2135
    %v2352 = vpack.c.b16 %v2144, %v2136
    %v2353 = vpack.c.b16 %v2145, %v2137
    %v2354 = vpack.c.b16 %v2146, %v2138
    %v2355 = vpack.c.b16 %v2147, %v2139
    %v2356 = vpack.c.b16 %v2148, %v2140
    %v2357 = vpack.c.b16 %v2149, %v2141
    %v2358 = vpack.c.b16 %v2158, %v2150
    %v2359 = vpack.c.b16 %v2159, %v2151
    %v2360 = vpack.c.b16 %v2160, %v2152
    %v2361 = vpack.c.b16 %v2161, %v2153
    %v2362 = vpack.c.b16 %v2162, %v2154
    %v2363 = vpack.c.b16 %v2163, %v2155
    %v2364 = vpack.c.b16 %v2164, %v2156
    %v2365 = vpack.c.b16 %v2165, %v2157
    %v2366 = vpack.c.b16 %v2174, %v2166
    %v2367 = vpack.c.b16 %v2175, %v2167
    %v2368 = vpack.c.b16 %v2176, %v2168
    %v2369 = vpack.c.b16 %v2177, %v2169
    %v2370 = vpack.c.b16 %v2178, %v2170
    %v2371 = vpack.c.b16 %v2179, %v2171
    %v2372 = vpack.c.b16 %v2180, %v2172
    %v2373 = vpack.c.b16 %v2181, %v2173
    %v2374 = vpack.c.b16 %v2190, %v2182
    %v2375 = vpack.c.b16 %v2191, %v2183
    %v2376 = vpack.c.b16 %v2192, %v2184
    %v2377 = vpack.c.b16 %v2193, %v2185
    %v2378 = vpack.c.b16 %v2194, %v2186
    %v2379 = vpack.c.b16 %v2195, %v2187
    %v2380 = vpack.c.b16 %v2196, %v2188
    %v2381 = vpack.c.b16 %v2197, %v2189
    %v2382 = vpack.c.b16 %v2206, %v2198
    %v2383 = vpack.c.b16 %v2207, %v2199
    %v2384 = vpack.c.b16 %v2208, %v2200
    %v2385 = vpack.c.b16 %v2209, %v2201
    %v2386 = vpack.c.b16 %v2210, %v2202
    %v2387 = vpack.c.b16 %v2211, %v2203
    %v2388 = vpack.c.b16 %v2212, %v2204
    %v2389 = vpack.c.b16 %v2213, %v2205
    %v2390 = vpack.c.b16 %v2222, %v2214
    %v2391 = vpack.c.b16 %v2223, %v2215
    %v2392 = vpack.c.b16 %v2224, %v2216
    %v2393 = vpack.c.b16 %v2225, %v2217
    %v2394 = vpack.c.b16 %v2226, %v2218
    %v2395 = vpack.c.b16 %v2227, %v2219
    %v2396 = vpack.c.b16 %v2228, %v2220
    %v2397 = vpack.c.b16 %v2229, %v2221
    %v2398 = vpack.c.b16 %v2238, %v2230
    %v2399 = vpack.c.b16 %v2239, %v2231
    %v2400 = vpack.c.b16 %v2240, %v2232
    %v2401 = vpack.c.b16 %v2241, %v2233
    %v2402 = vpack.c.b16 %v2242, %v2234
    %v2403 = vpack.c.b16 %v2243, %v2235
    %v2404 = vpack.c.b16 %v2244, %v2236
    %v2405 = vpack.c.b16 %v2245, %v2237
    %v2406 = vpack.c.b16 %v2254, %v2246
    %v2407 = vpack.c.b16 %v2255, %v2247
    %v2408 = vpack.c.b16 %v2256, %v2248
    %v2409 = vpack.c.b16 %v2257, %v2249
    %v2410 = vpack.c.b16 %v2258, %v2250
    %v2411 = vpack.c.b16 %v2259, %v2251
    %v2412 = vpack.c.b16 %v2260, %v2252
    %v2413 = vpack.c.b16 %v2261, %v2253
    %v2414 = vpack.c.b16 %v2270, %v2262
    %v2415 = vpack.c.b16 %v2271, %v2263
    %v2416 = vpack.c.b16 %v2272, %v2264
    %v2417 = vpack.c.b16 %v2273, %v2265
    %v2418 = vpack.c.b16 %v2274, %v2266
    %v2419 = vpack.c.b16 %v2275, %v2267
    %v2420 = vpack.c.b16 %v2276, %v2268
    %v2421 = vpack.c.b16 %v2277, %v2269
    %v2422 = vpack.c.b16 %v2286, %v2278
    %v2423 = vpack.c.b16 %v2287, %v2279
    %v2424 = vpack.c.b16 %v2288, %v2280
    %v2425 = vpack.c.b16 %v2289, %v2281
    %v2426 = vpack.c.b16 %v2290, %v2282
    %v2427 = vpack.c.b16 %v2291, %v2283
    %v2428 = vpack.c.b16 %v2292, %v2284
    %v2429 = vpack.c.b16 %v2293, %v2285
    %v2430 = vpack.c.b16 %v2302, %v2294
    %v2431 = vpack.c.b16 %v2303, %v2295
    %v2432 = vpack.c.b16 %v2304, %v2296
    %v2433 = vpack.c.b16 %v2305, %v2297
    %v2434 = vpack.c.b16 %v2306, %v2298
    %v2435 = vpack.c.b16 %v2307, %v2299
    %v2436 = vpack.c.b16 %v2308, %v2300
    %v2437 = vpack.c.b16 %v2309, %v2301
    %2566 = vmatprep.subr.bf16.mxu0 %v2311
    %2567 = vmatpush1.bf16.msra.mxu0 %v2310
    %2568 = vmatprep.subr.bf16.mxu0 %v2319
    %2569 = vmatpush1.bf16.msra.mxu0 %v2318
    %2570 = vmatprep.subr.bf16.mxu0 %v2327
    %2571 = vmatpush1.bf16.msra.mxu0 %v2326
    %2572 = vmatprep.subr.bf16.mxu0 %v2335
    %2573 = vmatpush1.bf16.msra.mxu0 %v2334
    %2574 = vmatprep.subr.bf16.mxu0 %v2343
    %2575 = vmatpush1.bf16.msra.mxu0 %v2342
    %2576 = vmatprep.subr.bf16.mxu0 %v2351
    %2577 = vmatpush1.bf16.msra.mxu0 %v2350
    %2578 = vmatprep.subr.bf16.mxu0 %v2359
    %2579 = vmatpush1.bf16.msra.mxu0 %v2358
    %2580 = vmatprep.subr.bf16.mxu0 %v2367
    %2581 = vmatpush1.bf16.msra.mxu0 %v2366
    %2582 = vmatprep.subr.bf16.mxu0 %v2375
    %2583 = vmatpush1.bf16.msra.mxu0 %v2374
    %2584 = vmatprep.subr.bf16.mxu0 %v2383
    %2585 = vmatpush1.bf16.msra.mxu0 %v2382
    %2586 = vmatprep.subr.bf16.mxu0 %v2391
    %2587 = vmatpush1.bf16.msra.mxu0 %v2390
    %2588 = vmatprep.subr.bf16.mxu0 %v2399
    %2589 = vmatpush1.bf16.msra.mxu0 %v2398
    %2590 = vmatprep.subr.bf16.mxu0 %v2407
    %2591 = vmatpush1.bf16.msra.mxu0 %v2406
    %2592 = vmatprep.subr.bf16.mxu0 %v2415
    %2593 = vmatpush1.bf16.msra.mxu0 %v2414
    %2594 = vmatprep.subr.bf16.mxu0 %v2423
    %2595 = vmatpush1.bf16.msra.mxu0 %v2422
    %2596 = vmatprep.subr.bf16.mxu0 %v2431
    %2597 = vmatpush1.bf16.msra.mxu0 %v2430
    %2598 = vmatprep.mubr.bf16.mxu0 %v1755
    %2599 = vmatmul.mubr.bf16.gmra.mrb[0].mxu0 %v1754
    %v2600 = vpop.f32.mrb[0].mxu0
    %v2601 = vadd.f32 %v1889, %v2600
    %v2602 = vpop.f32.mrb[0].mxu0
    %v2603 = vadd.f32 %v1893, %v2602
    %v2604 = vpop.f32.mrb[0].mxu0
    %v2605 = vpop.f32.mrb[0].mxu0
    %2606 = vdwg.mxu0
    %2607 = vmatprep.subr.bf16.mxu0 %v2313
    %2608 = vmatpush1.bf16.msra.mxu0 %v2312
    %2609 = vmatprep.subr.bf16.mxu0 %v2321
    %2610 = vmatpush1.bf16.msra.mxu0 %v2320
    %2611 = vmatprep.subr.bf16.mxu0 %v2329
    %2612 = vmatpush1.bf16.msra.mxu0 %v2328
    %2613 = vmatprep.subr.bf16.mxu0 %v2337
    %2614 = vmatpush1.bf16.msra.mxu0 %v2336
    %2615 = vmatprep.subr.bf16.mxu0 %v2345
    %2616 = vmatpush1.bf16.msra.mxu0 %v2344
    %2617 = vmatprep.subr.bf16.mxu0 %v2353
    %2618 = vmatpush1.bf16.msra.mxu0 %v2352
    %2619 = vmatprep.subr.bf16.mxu0 %v2361
    %2620 = vmatpush1.bf16.msra.mxu0 %v2360
    %2621 = vmatprep.subr.bf16.mxu0 %v2369
    %2622 = vmatpush1.bf16.msra.mxu0 %v2368
    %2623 = vmatprep.subr.bf16.mxu0 %v2377
    %2624 = vmatpush1.bf16.msra.mxu0 %v2376
    %2625 = vmatprep.subr.bf16.mxu0 %v2385
    %2626 = vmatpush1.bf16.msra.mxu0 %v2384
    %2627 = vmatprep.subr.bf16.mxu0 %v2393
    %2628 = vmatpush1.bf16.msra.mxu0 %v2392
    %2629 = vmatprep.subr.bf16.mxu0 %v2401
    %2630 = vmatpush1.bf16.msra.mxu0 %v2400
    %2631 = vmatprep.subr.bf16.mxu0 %v2409
    %2632 = vmatpush1.bf16.msra.mxu0 %v2408
    %2633 = vmatprep.subr.bf16.mxu0 %v2417
    %2634 = vmatpush1.bf16.msra.mxu0 %v2416
    %2635 = vmatprep.subr.bf16.mxu0 %v2425
    %2636 = vmatpush1.bf16.msra.mxu0 %v2424
    %2637 = vmatprep.subr.bf16.mxu0 %v2433
    %2638 = vmatpush1.bf16.msra.mxu0 %v2432
    %2639 = vmatprep.mubr.bf16.mxu0 %v1755
    %2640 = vmatmul.mubr.bf16.gmra.mrb[0].mxu0 %v1754
    %v2641 = vpop.f32.mrb[0].mxu0
    %v2642 = vadd.f32 %v1897, %v2641
    %v2643 = vpop.f32.mrb[0].mxu0
    %v2644 = vadd.f32 %v1901, %v2643
    %v2645 = vpop.f32.mrb[0].mxu0
    %v2646 = vpop.f32.mrb[0].mxu0
    %2647 = vdwg.mxu0
    %2648 = vmatprep.subr.bf16.mxu0 %v2315
    %2649 = vmatpush1.bf16.msra.mxu0 %v2314
    %2650 = vmatprep.subr.bf16.mxu0 %v2323
    %2651 = vmatpush1.bf16.msra.mxu0 %v2322
    %2652 = vmatprep.subr.bf16.mxu0 %v2331
    %2653 = vmatpush1.bf16.msra.mxu0 %v2330
    %2654 = vmatprep.subr.bf16.mxu0 %v2339
    %2655 = vmatpush1.bf16.msra.mxu0 %v2338
    %2656 = vmatprep.subr.bf16.mxu0 %v2347
    %2657 = vmatpush1.bf16.msra.mxu0 %v2346
    %2658 = vmatprep.subr.bf16.mxu0 %v2355
    %2659 = vmatpush1.bf16.msra.mxu0 %v2354
    %2660 = vmatprep.subr.bf16.mxu0 %v2363
    %2661 = vmatpush1.bf16.msra.mxu0 %v2362
    %2662 = vmatprep.subr.bf16.mxu0 %v2371
    %2663 = vmatpush1.bf16.msra.mxu0 %v2370
    %2664 = vmatprep.subr.bf16.mxu0 %v2379
    %2665 = vmatpush1.bf16.msra.mxu0 %v2378
    %2666 = vmatprep.subr.bf16.mxu0 %v2387
    %2667 = vmatpush1.bf16.msra.mxu0 %v2386
    %2668 = vmatprep.subr.bf16.mxu0 %v2395
    %2669 = vmatpush1.bf16.msra.mxu0 %v2394
    %2670 = vmatprep.subr.bf16.mxu0 %v2403
    %2671 = vmatpush1.bf16.msra.mxu0 %v2402
    %2672 = vmatprep.subr.bf16.mxu0 %v2411
    %2673 = vmatpush1.bf16.msra.mxu0 %v2410
    %2674 = vmatprep.subr.bf16.mxu0 %v2419
    %2675 = vmatpush1.bf16.msra.mxu0 %v2418
    %2676 = vmatprep.subr.bf16.mxu0 %v2427
    %2677 = vmatpush1.bf16.msra.mxu0 %v2426
    %2678 = vmatprep.subr.bf16.mxu0 %v2435
    %2679 = vmatpush1.bf16.msra.mxu0 %v2434
    %2680 = vmatprep.mubr.bf16.mxu0 %v1755
    %2681 = vmatmul.mubr.bf16.gmra.mrb[0].mxu0 %v1754
    %v2682 = vpop.f32.mrb[0].mxu0
    %v2683 = vadd.f32 %v1905, %v2682
    %v2684 = vpop.f32.mrb[0].mxu0
    %v2685 = vadd.f32 %v1909, %v2684
    %v2686 = vpop.f32.mrb[0].mxu0
    %v2687 = vpop.f32.mrb[0].mxu0
    %2688 = vdwg.mxu0
    %2689 = vmatprep.subr.bf16.mxu0 %v2317
    %2690 = vmatpush1.bf16.msra.mxu0 %v2316
    %2691 = vmatprep.subr.bf16.mxu0 %v2325
    %2692 = vmatpush1.bf16.msra.mxu0 %v2324
    %2693 = vmatprep.subr.bf16.mxu0 %v2333
    %2694 = vmatpush1.bf16.msra.mxu0 %v2332
    %2695 = vmatprep.subr.bf16.mxu0 %v2341
    %2696 = vmatpush1.bf16.msra.mxu0 %v2340
    %2697 = vmatprep.subr.bf16.mxu0 %v2349
    %2698 = vmatpush1.bf16.msra.mxu0 %v2348
    %2699 = vmatprep.subr.bf16.mxu0 %v2357
    %2700 = vmatpush1.bf16.msra.mxu0 %v2356
    %2701 = vmatprep.subr.bf16.mxu0 %v2365
    %2702 = vmatpush1.bf16.msra.mxu0 %v2364
    %2703 = vmatprep.subr.bf16.mxu0 %v2373
    %2704 = vmatpush1.bf16.msra.mxu0 %v2372
    %2705 = vmatprep.subr.bf16.mxu0 %v2381
    %2706 = vmatpush1.bf16.msra.mxu0 %v2380
    %2707 = vmatprep.subr.bf16.mxu0 %v2389
    %2708 = vmatpush1.bf16.msra.mxu0 %v2388
    %2709 = vmatprep.subr.bf16.mxu0 %v2397
    %2710 = vmatpush1.bf16.msra.mxu0 %v2396
    %2711 = vmatprep.subr.bf16.mxu0 %v2405
    %2712 = vmatpush1.bf16.msra.mxu0 %v2404
    %2713 = vmatprep.subr.bf16.mxu0 %v2413
    %2714 = vmatpush1.bf16.msra.mxu0 %v2412
    %2715 = vmatprep.subr.bf16.mxu0 %v2421
    %2716 = vmatpush1.bf16.msra.mxu0 %v2420
    %2717 = vmatprep.subr.bf16.mxu0 %v2429
    %2718 = vmatpush1.bf16.msra.mxu0 %v2428
    %2719 = vmatprep.subr.bf16.mxu0 %v2437
    %2720 = vmatpush1.bf16.msra.mxu0 %v2436
    %2721 = vmatprep.mubr.bf16.mxu0 %v1755
    %2722 = vmatmul.mubr.bf16.gmra.mrb[0].mxu0 %v1754
    %v2723 = vpop.f32.mrb[0].mxu0
    %v2724 = vadd.f32 %v1913, %v2723
    %v2725 = vpop.f32.mrb[0].mxu0
    %v2726 = vadd.f32 %v1917, %v2725
    %v2727 = vpop.f32.mrb[0].mxu0
    %v2728 = vpop.f32.mrb[0].mxu0
    %2729 = vdwg.mxu0
    %v2730 = vsub.f32 0.0, %v2601
    %v2731 = vsub.f32 0.0, %v2603
    %v2732 = vsub.f32 0.0, %v2642
    %v2733 = vsub.f32 0.0, %v2644
    %v2734 = vsub.f32 0.0, %v2683
    %v2735 = vsub.f32 0.0, %v2685
    %v2736 = vsub.f32 0.0, %v2724
    %v2737 = vsub.f32 0.0, %v2726
    %v2738 = vmul.f32 %v2730, 1.442695
    %v2739 = vpow.pop %v2738
    %v2740 = vmul.f32 %v2731, 1.442695
    %v2741 = vpow.pop %v2740
    %v2742 = vmul.f32 %v2732, 1.442695
    %v2743 = vpow.pop %v2742
    %v2744 = vmul.f32 %v2733, 1.442695
    %v2745 = vpow.pop %v2744
    %v2746 = vmul.f32 %v2734, 1.442695
    %v2747 = vpow.pop %v2746
    %v2748 = vmul.f32 %v2735, 1.442695
    %v2749 = vpow.pop %v2748
    %v2750 = vmul.f32 %v2736, 1.442695
    %v2751 = vpow.pop %v2750
    %v2752 = vmul.f32 %v2737, 1.442695
    %v2753 = vpow.pop %v2752
    %v2754 = vadd.f32 %v2739, 1.0
    %v2755 = vadd.f32 %v2741, 1.0
    %v2756 = vadd.f32 %v2743, 1.0
    %v2757 = vadd.f32 %v2745, 1.0
    %v2758 = vadd.f32 %v2747, 1.0
    %v2759 = vadd.f32 %v2749, 1.0
    %v2760 = vadd.f32 %v2751, 1.0
    %v2761 = vadd.f32 %v2753, 1.0
    %v2762 = vrcp.pop %v2754
    %v2763 = vmul.f32 1.0, %v2762
    %v2764 = vrcp.pop %v2755
    %v2765 = vmul.f32 1.0, %v2764
    %v2766 = vrcp.pop %v2756
    %v2767 = vmul.f32 1.0, %v2766
    %v2768 = vrcp.pop %v2757
    %v2769 = vmul.f32 1.0, %v2768
    %v2770 = vrcp.pop %v2758
    %v2771 = vmul.f32 1.0, %v2770
    %v2772 = vrcp.pop %v2759
    %v2773 = vmul.f32 1.0, %v2772
    %v2774 = vrcp.pop %v2760
    %v2775 = vmul.f32 1.0, %v2774
    %v2776 = vrcp.pop %v2761
    %v2777 = vmul.f32 1.0, %v2776
    %v2786 = vcombine.low %v2763, %v2765
    %v2787 = vcombine.low %v2767, %v2769
    %v2789 = vunpack.c.l.s4 1983009808
    %v2790 = vunpack.c.0.s8 %v2789
    %v2791 = vlaneseq
    %v2792 = vshrl.u32 %v2791, 7
    %v2793 = vsub.s32 %v2790, %v2792
    %v2794 = vrot.slane %v2786, %v2793
    %v2796 = vunpack.c.l.s4 1983009808
    %v2797 = vunpack.c.0.s8 %v2796
    %v2798 = vlaneseq
    %v2799 = vshrl.u32 %v2798, 7
    %v2800 = vsub.s32 %v2797, %v2799
    %v2801 = vrot.slane %v2787, %v2800
    %v2802 = vcombine.low %v2794, %v2801
    %v2803 = vcombine.low %v2771, %v2773
    %v2804 = vcombine.low %v2775, %v2777
    %v2806 = vunpack.c.l.s4 1983009808
    %v2807 = vunpack.c.0.s8 %v2806
    %v2808 = vlaneseq
    %v2809 = vshrl.u32 %v2808, 7
    %v2810 = vsub.s32 %v2807, %v2809
    %v2811 = vrot.slane %v2803, %v2810
    %v2813 = vunpack.c.l.s4 1983009808
    %v2814 = vunpack.c.0.s8 %v2813
    %v2815 = vlaneseq
    %v2816 = vshrl.u32 %v2815, 7
    %v2817 = vsub.s32 %v2814, %v2816
    %v2818 = vrot.slane %v2804, %v2817
    %v2819 = vcombine.low %v2811, %v2818
    %2822 = vst [vmem:[%s14] sm:$0xff] %v2802
    %2823 = vst [vmem:[%s14 + $0x8] sm:$0xff] %v2819
    %v2826 = vcombine.low %v1440, %v1442
    %v2828 = vunpack.c.l.s4 1983009808
    %v2829 = vunpack.c.0.s8 %v2828
    %v2830 = vlaneseq
    %v2831 = vshrl.u32 %v2830, 7
    %v2832 = vsub.s32 %v2829, %v2831
    %v2833 = vrot.slane %v2826, %v2832
    %2835 = vst [vmem:[%s15] sm:$0xf] %v2833
    %2836 = vst [vmem:[%s15 + $0x4] sm:$0x3] %v1598
    // Predicated region
    $region78: #{imu_vae_forward.1} parent=1 // pred_check
      _
    $region79: #{imu_vae_forward.1} parent=1 // pred_check_branch
      %2838 = sbr.rel (0) target = $region81
    $region80: #{imu_vae_forward.1} parent=1 // pred_region
      _
    $region81: #{imu_vae_forward.1} parent=1 // pred_fallthru
      _
    // Predicated region
    $region82: #{imu_vae_forward.1} parent=1 // pred_check
      _
    $region83: #{imu_vae_forward.1} parent=1 // pred_check_branch
      %2840 = sbr.rel (0) target = $region85
    $region84: #{imu_vae_forward.1} parent=1 // pred_region
      _
    $region85: #{imu_vae_forward.1} parent=1 // pred_fallthru
      _
    // Predicated region
    $region86: #{imu_vae_forward.1} parent=1 // pred_check
      _
    $region87: #{imu_vae_forward.1} parent=1 // pred_check_branch
      %2842 = sbr.rel (0) target = $region89
    $region88: #{imu_vae_forward.1} parent=1 // pred_region
      _
    $region89: #{imu_vae_forward.1} parent=1 // pred_fallthru
      _
    // Predicated region
    $region90: #{imu_vae_forward.1} parent=1 // pred_check
      _
    $region91: #{imu_vae_forward.1} parent=1 // pred_check_branch
      %2844 = sbr.rel (0) target = $region93
    $region92: #{imu_vae_forward.1} parent=1 // pred_region
      _
    $region93: #{imu_vae_forward.1} parent=1 // pred_fallthru
      _
    %2845 = vsyncpa [#allocation3], 1
    %2846 = vsyncpa [#allocation5], 1
    %2847 = vsyncpa [#allocation8], 1

</llo_original>
